<compile_context>
chip_gen: v7x
topology: tpu7x:2x2x1
jax: 0.10.0
libtpu: 0.0.40
codegen_flags: <defaults>
</compile_context>

<pallas_src>
import functools

import jax
import jax.numpy as jnp
from jax.experimental import pallas as pl
from jax.experimental.pallas import tpu as pltpu

LANE = 128


# ----------------------------------------------------------------------------
# Fused Pallas kernel: entire LanczosNet forward
# ----------------------------------------------------------------------------
def _lanczosnet_kernel(short_list, num_long, num_layer,
                       lap_ref, v_ref, vt_ref, evp_ref, x_ref,
                       fw_ref, fb_ref,
                       m1_ref, m1b_ref, m2_ref, m2b_ref,
                       cw_ref, cb_ref, ow_ref, ob_ref, o_ref):
    """Single grid step computes the whole forward.

    lap_ref: (N, N)            laplacian
    v_ref:   (N, k)            top-k eigenvectors
    vt_ref:  (k, N)            pre-transposed eigenvectors
    evp_ref: (k, LGP)          eigenvalue powers (zero-padded to LGP lanes)
    x_ref:   (N, F)            input node features
    fw_ref:  (F, HP)           feat-encoder weight (pre-transposed, lane-padded)
    fb_ref:  (1, HP)
    m1_ref:  (L, LGP, M)       filter-MLP layer-1 weights (pre-transposed)
    m1b_ref: (L, 1, M)
    m2_ref:  (L, M, LGP)
    m2b_ref: (L, 1, LGP)
    cw_ref:  (L, T, HP, HP)    per-term conv weight slices, (in, out) layout
    cb_ref:  (L, 1, HP)
    ow_ref:  (HP, CP)          final-encoder weight (pre-transposed, padded)
    ob_ref:  (1, CP)
    o_ref:   (N, CP)
    """
    lap = lap_ref[...]
    v = v_ref[...]
    vt = vt_ref[...]
    evp = evp_ref[...]

    # Feature encoder (dropout p=0.0 is the identity).
    h = (jnp.dot(x_ref[...], fw_ref[...], preferred_element_type=jnp.float32)
         + fb_ref[...])

    # Visit short-diffusion scales in ascending order (incremental power
    # chain) while keeping the original term -> weight-slice correspondence.
    order = sorted(range(len(short_list)), key=lambda t: short_list[t])
    n_short = len(short_list)

    for layer in range(num_layer):
        # Spectral-filter MLP on the (constant) eigenvalue powers: (k, LGP).
        h1 = jnp.maximum(
            jnp.dot(evp, m1_ref[layer], preferred_element_type=jnp.float32)
            + m1b_ref[layer], 0.0)
        filt = (jnp.dot(h1, m2_ref[layer], preferred_element_type=jnp.float32)
                + m2b_ref[layer])

        acc = jnp.zeros_like(h)

        # Short diffusion terms: running L-power chain, emit when s reached.
        cur = h
        power = 0
        for t in order:
            s = short_list[t]
            for _ in range(s - power):
                cur = jnp.dot(lap, cur, preferred_element_type=jnp.float32)
            power = s
            acc = acc + jnp.dot(cur, cw_ref[layer, t],
                                preferred_element_type=jnp.float32)

        # Long diffusion terms, factored:
        #   sum_i V diag(filt[:,i]) (V^T h) W_i = V @ sum_i (filt[:,i]*vtx) W_i
        vtx = jnp.dot(vt, h, preferred_element_type=jnp.float32)      # (k, HP)
        acc_k = jnp.zeros_like(vtx)
        for i in range(num_long):
            acc_k = acc_k + jnp.dot(filt[:, i:i + 1] * vtx,
                                    cw_ref[layer, n_short + i],
                                    preferred_element_type=jnp.float32)
        acc = acc + jnp.dot(v, acc_k, preferred_element_type=jnp.float32)

        h = jnp.maximum(acc + cb_ref[layer], 0.0)

    # Final encoder (lane-dense padded store; sliced back in the wrapper).
    o_ref[...] = (jnp.dot(h, ow_ref[...], preferred_element_type=jnp.float32)
                  + ob_ref[...]).astype(o_ref.dtype)


def _full_spec(shape):
    nd = len(shape)
    return pl.BlockSpec(shape, lambda i, nd=nd: (0,) * nd)


@functools.partial(jax.jit,
                   static_argnames=("short_list", "num_long", "num_layer",
                                    "num_classes"))
def lanczosnet_forward(x, prep, short_list, num_long, num_layer, num_classes):
    n = x.shape[0]
    cp = prep["final_wt"].shape[1]
    kernel = functools.partial(_lanczosnet_kernel, tuple(short_list),
                               num_long, num_layer)
    operands = (prep["lap"], prep["v"], prep["vt"], prep["evp"], x,
                prep["feat_wt"], prep["feat_b"],
                prep["mlp_w1t"], prep["mlp_b1"],
                prep["mlp_w2t"], prep["mlp_b2"],
                prep["conv_wt"], prep["conv_b"],
                prep["final_wt"], prep["final_b"])
    out = pl.pallas_call(
        kernel,
        out_shape=jax.ShapeDtypeStruct((n, cp), jnp.float32),
        grid=(1,),
        in_specs=[_full_spec(op.shape) for op in operands],
        out_specs=pl.BlockSpec((n, cp), lambda i: (0, 0)),
        compiler_params=pltpu.CompilerParams(
            dimension_semantics=("arbitrary",)),
    )(*operands)
    return out[:, :num_classes]


# ----------------------------------------------------------------------------
# One-time parameter preparation (layout plumbing hoisted out of the forward)
# ----------------------------------------------------------------------------
def _pad2(a, rows, cols):
    out = jnp.zeros((rows, cols), jnp.float32)
    return out.at[:a.shape[0], :a.shape[1]].set(a)


def _round_up(v, m):
    return ((v + m - 1) // m) * m


def prepare_params(params, lap, eigvecs, ev_long_pow, short_list, num_long,
                   hidden_dim, num_classes, mlp_dim):
    hp = _round_up(hidden_dim, LANE)       # lane-dense hidden width
    cp = _round_up(num_classes, LANE)      # lane-dense output width
    lgp = _round_up(num_long, 8)           # avoid sub-8 matmul dims
    n_short = len(short_list)
    t_total = n_short + num_long
    h = hidden_dim

    conv_wt, conv_b = [], []
    m1, m1b, m2, m2b = [], [], [], []
    for layer in params["layers"]:
        # (H_out, T*H_in) -> (T, H_in, H_out), zero-padded to (T, HP, HP)
        w = layer["conv_w"].reshape(h, t_total, h).transpose(1, 2, 0)
        conv_wt.append(
            jnp.zeros((t_total, hp, hp), jnp.float32).at[:, :h, :h].set(w))
        conv_b.append(_pad2(layer["conv_b"].reshape(1, -1), 1, hp))
        m1.append(_pad2(layer["mlp_w1"].T, lgp, mlp_dim))     # (LGP, M)
        m1b.append(layer["mlp_b1"].reshape(1, -1))            # (1, M)
        m2.append(_pad2(layer["mlp_w2"].T, mlp_dim, lgp))     # (M, LGP)
        m2b.append(_pad2(layer["mlp_b2"].reshape(1, -1), 1, lgp))

    return {
        "lap": lap.astype(jnp.float32),
        "v": eigvecs.astype(jnp.float32),
        "vt": eigvecs.T.astype(jnp.float32),
        "evp": _pad2(ev_long_pow, ev_long_pow.shape[0], lgp),
        "feat_wt": _pad2(params["feat_w"].T, params["feat_w"].shape[1], hp),
        "feat_b": _pad2(params["feat_b"].reshape(1, -1), 1, hp),
        "mlp_w1t": jnp.stack(m1), "mlp_b1": jnp.stack(m1b),
        "mlp_w2t": jnp.stack(m2), "mlp_b2": jnp.stack(m2b),
        "conv_wt": jnp.stack(conv_wt), "conv_b": jnp.stack(conv_b),
        "final_wt": _pad2(params["final_w"].T, hp, cp),
        "final_b": _pad2(params["final_b"].reshape(1, -1), 1, cp),
    }


# ----------------------------------------------------------------------------
# Pure-JAX reference (unpadded, mirrors the PyTorch module)
# ----------------------------------------------------------------------------
def reference_forward(x, params, lap, eigvecs, ev_long_pow, short_list,
                      num_long):
    def lin(z, w, b):
        return z @ w.T + b

    x = lin(x, params["feat_w"], params["feat_b"])
    for layer in params["layers"]:
        h1 = jnp.maximum(ev_long_pow @ layer["mlp_w1"].T + layer["mlp_b1"], 0.0)
        filt = h1 @ layer["mlp_w2"].T + layer["mlp_b2"]
        terms = []
        for s in short_list:
            cur = x
            for _ in range(s):
                cur = lap @ cur
            terms.append(cur)
        vtx = eigvecs.T @ x
        for i in range(num_long):
            terms.append(eigvecs @ (filt[:, i:i + 1] * vtx))
        cat = jnp.concatenate(terms, axis=1)
        x = jnp.maximum(lin(cat, layer["conv_w"], layer["conv_b"]), 0.0)
    x = lin(x, params["final_w"], params["final_b"])
    return x


def _uniform(key, shape, fan_in):
    bound = 1.0 / jnp.sqrt(jnp.asarray(float(fan_in)))
    return jax.random.uniform(key, shape, jnp.float32, -bound, bound)


def init_params(key, num_features, hidden_dim, num_classes, mlp_dim,
                num_layer, num_short, num_long):
    keys = jax.random.split(key, 4 + 8 * num_layer)
    p = {
        "feat_w": _uniform(keys[0], (hidden_dim, num_features), num_features),
        "feat_b": _uniform(keys[1], (hidden_dim,), num_features),
        "final_w": _uniform(keys[2], (num_classes, hidden_dim), hidden_dim),
        "final_b": _uniform(keys[3], (num_classes,), hidden_dim),
        "layers": [],
    }
    cat_dim = (num_short + num_long) * hidden_dim
    for li in range(num_layer):
        k = keys[4 + 8 * li: 4 + 8 * (li + 1)]
        p["layers"].append({
            "conv_w": _uniform(k[0], (hidden_dim, cat_dim), cat_dim),
            "conv_b": _uniform(k[1], (hidden_dim,), cat_dim),
            "mlp_w1": _uniform(k[2], (mlp_dim, num_long), num_long),
            "mlp_b1": _uniform(k[3], (mlp_dim,), num_long),
            "mlp_w2": _uniform(k[4], (num_long, mlp_dim), mlp_dim),
            "mlp_b2": _uniform(k[5], (num_long,), mlp_dim),
        })
    return p


if __name__ == "__main__":
    # Small deterministic problem.
    N = 16               # graph nodes
    num_features = 16
    hidden_dim = 32
    num_classes = 8
    k_eig = 8
    short_diffusion_list = [1, 2]
    long_diffusion_list = [3, 5, 7]
    mlp_dim = 16
    num_layer = 2
    dropout = 0.0        # identity (see TODO above)

    key = jax.random.PRNGKey(0)
    k_x, k_adj, k_par = jax.random.split(key, 3)

    # Build a symmetric normalized graph operator and its eigendecomposition.
    a = jax.random.uniform(k_adj, (N, N), jnp.float32)
    a = (a + a.T) * 0.5
    a = a * (1.0 - jnp.eye(N))
    d = jnp.sum(a, axis=1)
    d_inv_sqrt = 1.0 / jnp.sqrt(d + 1e-6)
    lap = d_inv_sqrt[:, None] * a * d_inv_sqrt[None, :]   # affinity-style operator

    eigenvalues, eigenvectors = jnp.linalg.eigh(lap)
    # Select top-k by |eigenvalue| (descending), as in the module __init__.
    idx = jnp.argsort(-jnp.abs(eigenvalues))[:k_eig]
    eigvals_k = eigenvalues[idx]                       # (k,)
    eigvecs_k = eigenvectors[:, idx]                   # (N, k)
    ev_long_pow = jnp.concatenate(
        [eigvals_k[:, None] ** p for p in long_diffusion_list], axis=1)  # (k, Lg)

    params = init_params(k_par, num_features, hidden_dim, num_classes, mlp_dim,
                         num_layer, len(short_diffusion_list),
                         len(long_diffusion_list))

    # One-time layout preparation (transposes / padding / stacking).
    prep = prepare_params(params, lap, eigvecs_k, ev_long_pow,
                          short_diffusion_list, len(long_diffusion_list),
                          hidden_dim, num_classes, mlp_dim)

    x = jax.random.normal(k_x, (N, num_features), jnp.float32)

    out = lanczosnet_forward(x, prep,
                             short_list=tuple(short_diffusion_list),
                             num_long=len(long_diffusion_list),
                             num_layer=num_layer,
                             num_classes=num_classes)
    out = jax.block_until_ready(out)

    ref = reference_forward(x, params, lap, eigvecs_k, ev_long_pow,
                            short_diffusion_list, len(long_diffusion_list))
    ref = jax.block_until_ready(ref)

    assert out.shape == (N, num_classes)
    assert jnp.allclose(out, ref, atol=1e-3, rtol=1e-3), "mismatch vs reference"
    print("KERNEL_OK")
</pallas_src>

<mosaic_0001>
module attributes {stable_mosaic.version = 11 : i64} {
  func.func @_lanczosnet_kernel(%arg0: i32, %arg1: memref<16x16xf32, #tpu.memory_space<vmem>>, %arg2: memref<16x8xf32, #tpu.memory_space<vmem>>, %arg3: memref<8x16xf32, #tpu.memory_space<vmem>>, %arg4: memref<8x8xf32, #tpu.memory_space<vmem>>, %arg5: memref<16x16xf32, #tpu.memory_space<vmem>>, %arg6: memref<16x128xf32, #tpu.memory_space<vmem>>, %arg7: memref<1x128xf32, #tpu.memory_space<vmem>>, %arg8: memref<2x8x16xf32, #tpu.memory_space<vmem>>, %arg9: memref<2x1x16xf32, #tpu.memory_space<vmem>>, %arg10: memref<2x16x8xf32, #tpu.memory_space<vmem>>, %arg11: memref<2x1x8xf32, #tpu.memory_space<vmem>>, %arg12: memref<2x5x128x128xf32, #tpu.memory_space<vmem>>, %arg13: memref<2x1x128xf32, #tpu.memory_space<vmem>>, %arg14: memref<128x128xf32, #tpu.memory_space<vmem>>, %arg15: memref<1x128xf32, #tpu.memory_space<vmem>>, %arg16: memref<16x128xf32, #tpu.memory_space<vmem>>) attributes {dimension_semantics = [#tpu.dimension_semantics<arbitrary>], iteration_bounds = array<i64: 1>, scalar_prefetch = 0 : i64, scratch_operands = 0 : i64, tpu.core_type = #tpu.core_type<tc>, window_params = [{pipeline_mode = #tpu.pipeline_mode<synchronous>, transform_indices = @transform_0, window_bounds = array<i64: 16, 16>}, {pipeline_mode = #tpu.pipeline_mode<synchronous>, transform_indices = @transform_1, window_bounds = array<i64: 16, 8>}, {pipeline_mode = #tpu.pipeline_mode<synchronous>, transform_indices = @transform_2, window_bounds = array<i64: 8, 16>}, {pipeline_mode = #tpu.pipeline_mode<synchronous>, transform_indices = @transform_3, window_bounds = array<i64: 8, 8>}, {pipeline_mode = #tpu.pipeline_mode<synchronous>, transform_indices = @transform_4, window_bounds = array<i64: 16, 16>}, {pipeline_mode = #tpu.pipeline_mode<synchronous>, transform_indices = @transform_5, window_bounds = array<i64: 16, 128>}, {pipeline_mode = #tpu.pipeline_mode<synchronous>, transform_indices = @transform_6, window_bounds = array<i64: 1, 128>}, {pipeline_mode = #tpu.pipeline_mode<synchronous>, transform_indices = @transform_7, window_bounds = array<i64: 2, 8, 16>}, {pipeline_mode = #tpu.pipeline_mode<synchronous>, transform_indices = @transform_8, window_bounds = array<i64: 2, 1, 16>}, {pipeline_mode = #tpu.pipeline_mode<synchronous>, transform_indices = @transform_9, window_bounds = array<i64: 2, 16, 8>}, {pipeline_mode = #tpu.pipeline_mode<synchronous>, transform_indices = @transform_10, window_bounds = array<i64: 2, 1, 8>}, {pipeline_mode = #tpu.pipeline_mode<synchronous>, transform_indices = @transform_11, window_bounds = array<i64: 2, 5, 128, 128>}, {pipeline_mode = #tpu.pipeline_mode<synchronous>, transform_indices = @transform_12, window_bounds = array<i64: 2, 1, 128>}, {pipeline_mode = #tpu.pipeline_mode<synchronous>, transform_indices = @transform_13, window_bounds = array<i64: 128, 128>}, {pipeline_mode = #tpu.pipeline_mode<synchronous>, transform_indices = @transform_14, window_bounds = array<i64: 1, 128>}, {pipeline_mode = #tpu.pipeline_mode<synchronous>, transform_indices = @transform_15, window_bounds = array<i64: 16, 128>}]} {
    %c0 = arith.constant 0 : index
    %c0_0 = arith.constant 0 : index
    %0 = vector.load %arg1[%c0, %c0_0] : memref<16x16xf32, #tpu.memory_space<vmem>>, vector<16x16xf32>
    %c0_1 = arith.constant 0 : index
    %c0_2 = arith.constant 0 : index
    %1 = vector.load %arg2[%c0_1, %c0_2] : memref<16x8xf32, #tpu.memory_space<vmem>>, vector<16x8xf32>
    %c0_3 = arith.constant 0 : index
    %c0_4 = arith.constant 0 : index
    %2 = vector.load %arg3[%c0_3, %c0_4] : memref<8x16xf32, #tpu.memory_space<vmem>>, vector<8x16xf32>
    %c0_5 = arith.constant 0 : index
    %c0_6 = arith.constant 0 : index
    %3 = vector.load %arg4[%c0_5, %c0_6] : memref<8x8xf32, #tpu.memory_space<vmem>>, vector<8x8xf32>
    %c0_7 = arith.constant 0 : index
    %c0_8 = arith.constant 0 : index
    %4 = vector.load %arg5[%c0_7, %c0_8] : memref<16x16xf32, #tpu.memory_space<vmem>>, vector<16x16xf32>
    %c0_9 = arith.constant 0 : index
    %c0_10 = arith.constant 0 : index
    %5 = vector.load %arg6[%c0_9, %c0_10] : memref<16x128xf32, #tpu.memory_space<vmem>>, vector<16x128xf32>
    %cst = arith.constant dense<0.000000e+00> : vector<16x128xf32>
    %6 = tpu.matmul %4, %5, %cst {dimension_numbers = #tpu.dot_dimension_numbers<[1], [0], [0], [1], [0, 0, 1, 1], [], []>} : vector<16x16xf32>, vector<16x128xf32>, vector<16x128xf32> -> vector<16x128xf32>
    %c0_11 = arith.constant 0 : index
    %c0_12 = arith.constant 0 : index
    %7 = vector.load %arg7[%c0_11, %c0_12] : memref<1x128xf32, #tpu.memory_space<vmem>>, vector<1x128xf32>
    %8 = vector.broadcast %7 : vector<1x128xf32> to vector<16x128xf32>
    %9 = arith.addf %6, %8 : vector<16x128xf32>
    %c0_13 = arith.constant 0 : index
    %c0_14 = arith.constant 0 : index
    %c0_15 = arith.constant 0 : index
    %10 = vector.load %arg8[%c0_13, %c0_14, %c0_15] : memref<2x8x16xf32, #tpu.memory_space<vmem>>, vector<1x8x16xf32>
    %11 = vector.shape_cast %10 : vector<1x8x16xf32> to vector<8x16xf32>
    %cst_16 = arith.constant dense<0.000000e+00> : vector<8x16xf32>
    %12 = tpu.matmul %3, %11, %cst_16 {dimension_numbers = #tpu.dot_dimension_numbers<[1], [0], [0], [1], [0, 0, 1, 1], [], []>} : vector<8x8xf32>, vector<8x16xf32>, vector<8x16xf32> -> vector<8x16xf32>
    %c0_17 = arith.constant 0 : index
    %c0_18 = arith.constant 0 : index
    %c0_19 = arith.constant 0 : index
    %13 = vector.load %arg9[%c0_17, %c0_18, %c0_19] : memref<2x1x16xf32, #tpu.memory_space<vmem>>, vector<1x1x16xf32>
    %14 = vector.shape_cast %13 : vector<1x1x16xf32> to vector<1x16xf32>
    %15 = vector.broadcast %14 : vector<1x16xf32> to vector<8x16xf32>
    %16 = arith.addf %12, %15 : vector<8x16xf32>
    %cst_20 = arith.constant 0.000000e+00 : f32
    %17 = vector.broadcast %cst_20 : f32 to vector<8x16xf32>
    %18 = arith.maximumf %16, %17 : vector<8x16xf32>
    %c0_21 = arith.constant 0 : index
    %c0_22 = arith.constant 0 : index
    %c0_23 = arith.constant 0 : index
    %19 = vector.load %arg10[%c0_21, %c0_22, %c0_23] : memref<2x16x8xf32, #tpu.memory_space<vmem>>, vector<1x16x8xf32>
    %20 = vector.shape_cast %19 : vector<1x16x8xf32> to vector<16x8xf32>
    %cst_24 = arith.constant dense<0.000000e+00> : vector<8x8xf32>
    %21 = tpu.matmul %18, %20, %cst_24 {dimension_numbers = #tpu.dot_dimension_numbers<[1], [0], [0], [1], [0, 0, 1, 1], [], []>} : vector<8x16xf32>, vector<16x8xf32>, vector<8x8xf32> -> vector<8x8xf32>
    %c0_25 = arith.constant 0 : index
    %c0_26 = arith.constant 0 : index
    %c0_27 = arith.constant 0 : index
    %22 = vector.load %arg11[%c0_25, %c0_26, %c0_27] : memref<2x1x8xf32, #tpu.memory_space<vmem>>, vector<1x1x8xf32>
    %23 = vector.shape_cast %22 : vector<1x1x8xf32> to vector<1x8xf32>
    %24 = vector.broadcast %23 : vector<1x8xf32> to vector<8x8xf32>
    %25 = arith.addf %21, %24 : vector<8x8xf32>
    %cst_28 = arith.constant 0.000000e+00 : f32
    %26 = vector.broadcast %cst_28 : f32 to vector<16x128xf32>
    %cst_29 = arith.constant dense<0.000000e+00> : vector<16x128xf32>
    %27 = tpu.matmul %0, %9, %cst_29 {dimension_numbers = #tpu.dot_dimension_numbers<[1], [0], [0], [1], [0, 0, 1, 1], [], []>} : vector<16x16xf32>, vector<16x128xf32>, vector<16x128xf32> -> vector<16x128xf32>
    %c0_30 = arith.constant 0 : index
    %c0_31 = arith.constant 0 : index
    %c0_32 = arith.constant 0 : index
    %c0_33 = arith.constant 0 : index
    %28 = vector.load %arg12[%c0_30, %c0_31, %c0_32, %c0_33] : memref<2x5x128x128xf32, #tpu.memory_space<vmem>>, vector<1x1x128x128xf32>
    %29 = vector.shape_cast %28 : vector<1x1x128x128xf32> to vector<128x128xf32>
    %cst_34 = arith.constant dense<0.000000e+00> : vector<16x128xf32>
    %30 = tpu.matmul %27, %29, %cst_34 {dimension_numbers = #tpu.dot_dimension_numbers<[1], [0], [0], [1], [0, 0, 1, 1], [], []>} : vector<16x128xf32>, vector<128x128xf32>, vector<16x128xf32> -> vector<16x128xf32>
    %31 = arith.addf %26, %30 : vector<16x128xf32>
    %cst_35 = arith.constant dense<0.000000e+00> : vector<16x128xf32>
    %32 = tpu.matmul %0, %27, %cst_35 {dimension_numbers = #tpu.dot_dimension_numbers<[1], [0], [0], [1], [0, 0, 1, 1], [], []>} : vector<16x16xf32>, vector<16x128xf32>, vector<16x128xf32> -> vector<16x128xf32>
    %c0_36 = arith.constant 0 : index
    %c1 = arith.constant 1 : index
    %c0_37 = arith.constant 0 : index
    %c0_38 = arith.constant 0 : index
    %33 = vector.load %arg12[%c0_36, %c1, %c0_37, %c0_38] : memref<2x5x128x128xf32, #tpu.memory_space<vmem>>, vector<1x1x128x128xf32>
    %34 = vector.shape_cast %33 : vector<1x1x128x128xf32> to vector<128x128xf32>
    %cst_39 = arith.constant dense<0.000000e+00> : vector<16x128xf32>
    %35 = tpu.matmul %32, %34, %cst_39 {dimension_numbers = #tpu.dot_dimension_numbers<[1], [0], [0], [1], [0, 0, 1, 1], [], []>} : vector<16x128xf32>, vector<128x128xf32>, vector<16x128xf32> -> vector<16x128xf32>
    %36 = arith.addf %31, %35 : vector<16x128xf32>
    %cst_40 = arith.constant dense<0.000000e+00> : vector<8x128xf32>
    %37 = tpu.matmul %2, %9, %cst_40 {dimension_numbers = #tpu.dot_dimension_numbers<[1], [0], [0], [1], [0, 0, 1, 1], [], []>} : vector<8x16xf32>, vector<16x128xf32>, vector<8x128xf32> -> vector<8x128xf32>
    %cst_41 = arith.constant 0.000000e+00 : f32
    %38 = vector.broadcast %cst_41 : f32 to vector<8x128xf32>
    %39 = vector.extract_strided_slice %25 {offsets = [0, 0], sizes = [8, 1], strides = [1, 1]} : vector<8x8xf32> to vector<8x1xf32>
    %40 = vector.broadcast %39 : vector<8x1xf32> to vector<8x128xf32>
    %41 = arith.mulf %40, %37 : vector<8x128xf32>
    %c0_42 = arith.constant 0 : index
    %c2 = arith.constant 2 : index
    %c0_43 = arith.constant 0 : index
    %c0_44 = arith.constant 0 : index
    %42 = vector.load %arg12[%c0_42, %c2, %c0_43, %c0_44] : memref<2x5x128x128xf32, #tpu.memory_space<vmem>>, vector<1x1x128x128xf32>
    %43 = vector.shape_cast %42 : vector<1x1x128x128xf32> to vector<128x128xf32>
    %cst_45 = arith.constant dense<0.000000e+00> : vector<8x128xf32>
    %44 = tpu.matmul %41, %43, %cst_45 {dimension_numbers = #tpu.dot_dimension_numbers<[1], [0], [0], [1], [0, 0, 1, 1], [], []>} : vector<8x128xf32>, vector<128x128xf32>, vector<8x128xf32> -> vector<8x128xf32>
    %45 = arith.addf %38, %44 : vector<8x128xf32>
    %46 = vector.extract_strided_slice %25 {offsets = [0, 1], sizes = [8, 1], strides = [1, 1]} : vector<8x8xf32> to vector<8x1xf32>
    %47 = vector.broadcast %46 : vector<8x1xf32> to vector<8x128xf32>
    %48 = arith.mulf %47, %37 : vector<8x128xf32>
    %c0_46 = arith.constant 0 : index
    %c3 = arith.constant 3 : index
    %c0_47 = arith.constant 0 : index
    %c0_48 = arith.constant 0 : index
    %49 = vector.load %arg12[%c0_46, %c3, %c0_47, %c0_48] : memref<2x5x128x128xf32, #tpu.memory_space<vmem>>, vector<1x1x128x128xf32>
    %50 = vector.shape_cast %49 : vector<1x1x128x128xf32> to vector<128x128xf32>
    %cst_49 = arith.constant dense<0.000000e+00> : vector<8x128xf32>
    %51 = tpu.matmul %48, %50, %cst_49 {dimension_numbers = #tpu.dot_dimension_numbers<[1], [0], [0], [1], [0, 0, 1, 1], [], []>} : vector<8x128xf32>, vector<128x128xf32>, vector<8x128xf32> -> vector<8x128xf32>
    %52 = arith.addf %45, %51 : vector<8x128xf32>
    %53 = vector.extract_strided_slice %25 {offsets = [0, 2], sizes = [8, 1], strides = [1, 1]} : vector<8x8xf32> to vector<8x1xf32>
    %54 = vector.broadcast %53 : vector<8x1xf32> to vector<8x128xf32>
    %55 = arith.mulf %54, %37 : vector<8x128xf32>
    %c0_50 = arith.constant 0 : index
    %c4 = arith.constant 4 : index
    %c0_51 = arith.constant 0 : index
    %c0_52 = arith.constant 0 : index
    %56 = vector.load %arg12[%c0_50, %c4, %c0_51, %c0_52] : memref<2x5x128x128xf32, #tpu.memory_space<vmem>>, vector<1x1x128x128xf32>
    %57 = vector.shape_cast %56 : vector<1x1x128x128xf32> to vector<128x128xf32>
    %cst_53 = arith.constant dense<0.000000e+00> : vector<8x128xf32>
    %58 = tpu.matmul %55, %57, %cst_53 {dimension_numbers = #tpu.dot_dimension_numbers<[1], [0], [0], [1], [0, 0, 1, 1], [], []>} : vector<8x128xf32>, vector<128x128xf32>, vector<8x128xf32> -> vector<8x128xf32>
    %59 = arith.addf %52, %58 : vector<8x128xf32>
    %cst_54 = arith.constant dense<0.000000e+00> : vector<16x128xf32>
    %60 = tpu.matmul %1, %59, %cst_54 {dimension_numbers = #tpu.dot_dimension_numbers<[1], [0], [0], [1], [0, 0, 1, 1], [], []>} : vector<16x8xf32>, vector<8x128xf32>, vector<16x128xf32> -> vector<16x128xf32>
    %61 = arith.addf %36, %60 : vector<16x128xf32>
    %c0_55 = arith.constant 0 : index
    %c0_56 = arith.constant 0 : index
    %c0_57 = arith.constant 0 : index
    %62 = vector.load %arg13[%c0_55, %c0_56, %c0_57] : memref<2x1x128xf32, #tpu.memory_space<vmem>>, vector<1x1x128xf32>
    %63 = vector.shape_cast %62 : vector<1x1x128xf32> to vector<1x128xf32>
    %64 = vector.broadcast %63 : vector<1x128xf32> to vector<16x128xf32>
    %65 = arith.addf %61, %64 : vector<16x128xf32>
    %cst_58 = arith.constant 0.000000e+00 : f32
    %66 = vector.broadcast %cst_58 : f32 to vector<16x128xf32>
    %67 = arith.maximumf %65, %66 : vector<16x128xf32>
    %c1_59 = arith.constant 1 : index
    %c0_60 = arith.constant 0 : index
    %c0_61 = arith.constant 0 : index
    %68 = vector.load %arg8[%c1_59, %c0_60, %c0_61] : memref<2x8x16xf32, #tpu.memory_space<vmem>>, vector<1x8x16xf32>
    %69 = vector.shape_cast %68 : vector<1x8x16xf32> to vector<8x16xf32>
    %cst_62 = arith.constant dense<0.000000e+00> : vector<8x16xf32>
    %70 = tpu.matmul %3, %69, %cst_62 {dimension_numbers = #tpu.dot_dimension_numbers<[1], [0], [0], [1], [0, 0, 1, 1], [], []>} : vector<8x8xf32>, vector<8x16xf32>, vector<8x16xf32> -> vector<8x16xf32>
    %c1_63 = arith.constant 1 : index
    %c0_64 = arith.constant 0 : index
    %c0_65 = arith.constant 0 : index
    %71 = vector.load %arg9[%c1_63, %c0_64, %c0_65] : memref<2x1x16xf32, #tpu.memory_space<vmem>>, vector<1x1x16xf32>
    %72 = vector.shape_cast %71 : vector<1x1x16xf32> to vector<1x16xf32>
    %73 = vector.broadcast %72 : vector<1x16xf32> to vector<8x16xf32>
    %74 = arith.addf %70, %73 : vector<8x16xf32>
    %cst_66 = arith.constant 0.000000e+00 : f32
    %75 = vector.broadcast %cst_66 : f32 to vector<8x16xf32>
    %76 = arith.maximumf %74, %75 : vector<8x16xf32>
    %c1_67 = arith.constant 1 : index
    %c0_68 = arith.constant 0 : index
    %c0_69 = arith.constant 0 : index
    %77 = vector.load %arg10[%c1_67, %c0_68, %c0_69] : memref<2x16x8xf32, #tpu.memory_space<vmem>>, vector<1x16x8xf32>
    %78 = vector.shape_cast %77 : vector<1x16x8xf32> to vector<16x8xf32>
    %cst_70 = arith.constant dense<0.000000e+00> : vector<8x8xf32>
    %79 = tpu.matmul %76, %78, %cst_70 {dimension_numbers = #tpu.dot_dimension_numbers<[1], [0], [0], [1], [0, 0, 1, 1], [], []>} : vector<8x16xf32>, vector<16x8xf32>, vector<8x8xf32> -> vector<8x8xf32>
    %c1_71 = arith.constant 1 : index
    %c0_72 = arith.constant 0 : index
    %c0_73 = arith.constant 0 : index
    %80 = vector.load %arg11[%c1_71, %c0_72, %c0_73] : memref<2x1x8xf32, #tpu.memory_space<vmem>>, vector<1x1x8xf32>
    %81 = vector.shape_cast %80 : vector<1x1x8xf32> to vector<1x8xf32>
    %82 = vector.broadcast %81 : vector<1x8xf32> to vector<8x8xf32>
    %83 = arith.addf %79, %82 : vector<8x8xf32>
    %cst_74 = arith.constant 0.000000e+00 : f32
    %84 = vector.broadcast %cst_74 : f32 to vector<16x128xf32>
    %cst_75 = arith.constant dense<0.000000e+00> : vector<16x128xf32>
    %85 = tpu.matmul %0, %67, %cst_75 {dimension_numbers = #tpu.dot_dimension_numbers<[1], [0], [0], [1], [0, 0, 1, 1], [], []>} : vector<16x16xf32>, vector<16x128xf32>, vector<16x128xf32> -> vector<16x128xf32>
    %c1_76 = arith.constant 1 : index
    %c0_77 = arith.constant 0 : index
    %c0_78 = arith.constant 0 : index
    %c0_79 = arith.constant 0 : index
    %86 = vector.load %arg12[%c1_76, %c0_77, %c0_78, %c0_79] : memref<2x5x128x128xf32, #tpu.memory_space<vmem>>, vector<1x1x128x128xf32>
    %87 = vector.shape_cast %86 : vector<1x1x128x128xf32> to vector<128x128xf32>
    %cst_80 = arith.constant dense<0.000000e+00> : vector<16x128xf32>
    %88 = tpu.matmul %85, %87, %cst_80 {dimension_numbers = #tpu.dot_dimension_numbers<[1], [0], [0], [1], [0, 0, 1, 1], [], []>} : vector<16x128xf32>, vector<128x128xf32>, vector<16x128xf32> -> vector<16x128xf32>
    %89 = arith.addf %84, %88 : vector<16x128xf32>
    %cst_81 = arith.constant dense<0.000000e+00> : vector<16x128xf32>
    %90 = tpu.matmul %0, %85, %cst_81 {dimension_numbers = #tpu.dot_dimension_numbers<[1], [0], [0], [1], [0, 0, 1, 1], [], []>} : vector<16x16xf32>, vector<16x128xf32>, vector<16x128xf32> -> vector<16x128xf32>
    %c1_82 = arith.constant 1 : index
    %c1_83 = arith.constant 1 : index
    %c0_84 = arith.constant 0 : index
    %c0_85 = arith.constant 0 : index
    %91 = vector.load %arg12[%c1_82, %c1_83, %c0_84, %c0_85] : memref<2x5x128x128xf32, #tpu.memory_space<vmem>>, vector<1x1x128x128xf32>
    %92 = vector.shape_cast %91 : vector<1x1x128x128xf32> to vector<128x128xf32>
    %cst_86 = arith.constant dense<0.000000e+00> : vector<16x128xf32>
    %93 = tpu.matmul %90, %92, %cst_86 {dimension_numbers = #tpu.dot_dimension_numbers<[1], [0], [0], [1], [0, 0, 1, 1], [], []>} : vector<16x128xf32>, vector<128x128xf32>, vector<16x128xf32> -> vector<16x128xf32>
    %94 = arith.addf %89, %93 : vector<16x128xf32>
    %cst_87 = arith.constant dense<0.000000e+00> : vector<8x128xf32>
    %95 = tpu.matmul %2, %67, %cst_87 {dimension_numbers = #tpu.dot_dimension_numbers<[1], [0], [0], [1], [0, 0, 1, 1], [], []>} : vector<8x16xf32>, vector<16x128xf32>, vector<8x128xf32> -> vector<8x128xf32>
    %cst_88 = arith.constant 0.000000e+00 : f32
    %96 = vector.broadcast %cst_88 : f32 to vector<8x128xf32>
    %97 = vector.extract_strided_slice %83 {offsets = [0, 0], sizes = [8, 1], strides = [1, 1]} : vector<8x8xf32> to vector<8x1xf32>
    %98 = vector.broadcast %97 : vector<8x1xf32> to vector<8x128xf32>
    %99 = arith.mulf %98, %95 : vector<8x128xf32>
    %c1_89 = arith.constant 1 : index
    %c2_90 = arith.constant 2 : index
    %c0_91 = arith.constant 0 : index
    %c0_92 = arith.constant 0 : index
    %100 = vector.load %arg12[%c1_89, %c2_90, %c0_91, %c0_92] : memref<2x5x128x128xf32, #tpu.memory_space<vmem>>, vector<1x1x128x128xf32>
    %101 = vector.shape_cast %100 : vector<1x1x128x128xf32> to vector<128x128xf32>
    %cst_93 = arith.constant dense<0.000000e+00> : vector<8x128xf32>
    %102 = tpu.matmul %99, %101, %cst_93 {dimension_numbers = #tpu.dot_dimension_numbers<[1], [0], [0], [1], [0, 0, 1, 1], [], []>} : vector<8x128xf32>, vector<128x128xf32>, vector<8x128xf32> -> vector<8x128xf32>
    %103 = arith.addf %96, %102 : vector<8x128xf32>
    %104 = vector.extract_strided_slice %83 {offsets = [0, 1], sizes = [8, 1], strides = [1, 1]} : vector<8x8xf32> to vector<8x1xf32>
    %105 = vector.broadcast %104 : vector<8x1xf32> to vector<8x128xf32>
    %106 = arith.mulf %105, %95 : vector<8x128xf32>
    %c1_94 = arith.constant 1 : index
    %c3_95 = arith.constant 3 : index
    %c0_96 = arith.constant 0 : index
    %c0_97 = arith.constant 0 : index
    %107 = vector.load %arg12[%c1_94, %c3_95, %c0_96, %c0_97] : memref<2x5x128x128xf32, #tpu.memory_space<vmem>>, vector<1x1x128x128xf32>
    %108 = vector.shape_cast %107 : vector<1x1x128x128xf32> to vector<128x128xf32>
    %cst_98 = arith.constant dense<0.000000e+00> : vector<8x128xf32>
    %109 = tpu.matmul %106, %108, %cst_98 {dimension_numbers = #tpu.dot_dimension_numbers<[1], [0], [0], [1], [0, 0, 1, 1], [], []>} : vector<8x128xf32>, vector<128x128xf32>, vector<8x128xf32> -> vector<8x128xf32>
    %110 = arith.addf %103, %109 : vector<8x128xf32>
    %111 = vector.extract_strided_slice %83 {offsets = [0, 2], sizes = [8, 1], strides = [1, 1]} : vector<8x8xf32> to vector<8x1xf32>
    %112 = vector.broadcast %111 : vector<8x1xf32> to vector<8x128xf32>
    %113 = arith.mulf %112, %95 : vector<8x128xf32>
    %c1_99 = arith.constant 1 : index
    %c4_100 = arith.constant 4 : index
    %c0_101 = arith.constant 0 : index
    %c0_102 = arith.constant 0 : index
    %114 = vector.load %arg12[%c1_99, %c4_100, %c0_101, %c0_102] : memref<2x5x128x128xf32, #tpu.memory_space<vmem>>, vector<1x1x128x128xf32>
    %115 = vector.shape_cast %114 : vector<1x1x128x128xf32> to vector<128x128xf32>
    %cst_103 = arith.constant dense<0.000000e+00> : vector<8x128xf32>
    %116 = tpu.matmul %113, %115, %cst_103 {dimension_numbers = #tpu.dot_dimension_numbers<[1], [0], [0], [1], [0, 0, 1, 1], [], []>} : vector<8x128xf32>, vector<128x128xf32>, vector<8x128xf32> -> vector<8x128xf32>
    %117 = arith.addf %110, %116 : vector<8x128xf32>
    %cst_104 = arith.constant dense<0.000000e+00> : vector<16x128xf32>
    %118 = tpu.matmul %1, %117, %cst_104 {dimension_numbers = #tpu.dot_dimension_numbers<[1], [0], [0], [1], [0, 0, 1, 1], [], []>} : vector<16x8xf32>, vector<8x128xf32>, vector<16x128xf32> -> vector<16x128xf32>
    %119 = arith.addf %94, %118 : vector<16x128xf32>
    %c1_105 = arith.constant 1 : index
    %c0_106 = arith.constant 0 : index
    %c0_107 = arith.constant 0 : index
    %120 = vector.load %arg13[%c1_105, %c0_106, %c0_107] : memref<2x1x128xf32, #tpu.memory_space<vmem>>, vector<1x1x128xf32>
    %121 = vector.shape_cast %120 : vector<1x1x128xf32> to vector<1x128xf32>
    %122 = vector.broadcast %121 : vector<1x128xf32> to vector<16x128xf32>
    %123 = arith.addf %119, %122 : vector<16x128xf32>
    %cst_108 = arith.constant 0.000000e+00 : f32
    %124 = vector.broadcast %cst_108 : f32 to vector<16x128xf32>
    %125 = arith.maximumf %123, %124 : vector<16x128xf32>
    %c0_109 = arith.constant 0 : index
    %c0_110 = arith.constant 0 : index
    %126 = vector.load %arg14[%c0_109, %c0_110] : memref<128x128xf32, #tpu.memory_space<vmem>>, vector<128x128xf32>
    %cst_111 = arith.constant dense<0.000000e+00> : vector<16x128xf32>
    %127 = tpu.matmul %125, %126, %cst_111 {dimension_numbers = #tpu.dot_dimension_numbers<[1], [0], [0], [1], [0, 0, 1, 1], [], []>} : vector<16x128xf32>, vector<128x128xf32>, vector<16x128xf32> -> vector<16x128xf32>
    %c0_112 = arith.constant 0 : index
    %c0_113 = arith.constant 0 : index
    %128 = vector.load %arg15[%c0_112, %c0_113] : memref<1x128xf32, #tpu.memory_space<vmem>>, vector<1x128xf32>
    %129 = vector.broadcast %128 : vector<1x128xf32> to vector<16x128xf32>
    %130 = arith.addf %127, %129 : vector<16x128xf32>
    %c0_114 = arith.constant 0 : index
    %c0_115 = arith.constant 0 : index
    %131 = vector.load %arg16[%c0_114, %c0_115] : memref<16x128xf32, #tpu.memory_space<vmem>>, vector<16x128xf32>
    tpu.vector_store %arg16[%c0_114, %c0_115], %130 {strides = array<i32>} : memref<16x128xf32, #tpu.memory_space<vmem>>, vector<16x128xf32>,
    return
  }
  func.func @transform_0(%arg0: i32) -> (i32, i32) {
    %c0_i32 = arith.constant 0 : i32
    %c0_i32_0 = arith.constant 0 : i32
    %c0_i32_1 = arith.constant 0 : i32
    return %c0_i32, %c0_i32_0 : i32, i32
  }
  func.func @transform_1(%arg0: i32) -> (i32, i32) {
    %c0_i32 = arith.constant 0 : i32
    %c0_i32_0 = arith.constant 0 : i32
    %c0_i32_1 = arith.constant 0 : i32
    return %c0_i32, %c0_i32_0 : i32, i32
  }
  func.func @transform_2(%arg0: i32) -> (i32, i32) {
    %c0_i32 = arith.constant 0 : i32
    %c0_i32_0 = arith.constant 0 : i32
    %c0_i32_1 = arith.constant 0 : i32
    return %c0_i32, %c0_i32_0 : i32, i32
  }
  func.func @transform_3(%arg0: i32) -> (i32, i32) {
    %c0_i32 = arith.constant 0 : i32
    %c0_i32_0 = arith.constant 0 : i32
    %c0_i32_1 = arith.constant 0 : i32
    return %c0_i32, %c0_i32_0 : i32, i32
  }
  func.func @transform_4(%arg0: i32) -> (i32, i32) {
    %c0_i32 = arith.constant 0 : i32
    %c0_i32_0 = arith.constant 0 : i32
    %c0_i32_1 = arith.constant 0 : i32
    return %c0_i32, %c0_i32_0 : i32, i32
  }
  func.func @transform_5(%arg0: i32) -> (i32, i32) {
    %c0_i32 = arith.constant 0 : i32
    %c0_i32_0 = arith.constant 0 : i32
    %c0_i32_1 = arith.constant 0 : i32
    return %c0_i32, %c0_i32_0 : i32, i32
  }
  func.func @transform_6(%arg0: i32) -> (i32, i32) {
    %c0_i32 = arith.constant 0 : i32
    %c0_i32_0 = arith.constant 0 : i32
    %c0_i32_1 = arith.constant 0 : i32
    return %c0_i32, %c0_i32_0 : i32, i32
  }
  func.func @transform_7(%arg0: i32) -> (i32, i32, i32) {
    %c0_i32 = arith.constant 0 : i32
    %c0_i32_0 = arith.constant 0 : i32
    %c0_i32_1 = arith.constant 0 : i32
    %c0_i32_2 = arith.constant 0 : i32
    return %c0_i32, %c0_i32_0, %c0_i32_1 : i32, i32, i32
  }
  func.func @transform_8(%arg0: i32) -> (i32, i32, i32) {
    %c0_i32 = arith.constant 0 : i32
    %c0_i32_0 = arith.constant 0 : i32
    %c0_i32_1 = arith.constant 0 : i32
    %c0_i32_2 = arith.constant 0 : i32
    return %c0_i32, %c0_i32_0, %c0_i32_1 : i32, i32, i32
  }
  func.func @transform_9(%arg0: i32) -> (i32, i32, i32) {
    %c0_i32 = arith.constant 0 : i32
    %c0_i32_0 = arith.constant 0 : i32
    %c0_i32_1 = arith.constant 0 : i32
    %c0_i32_2 = arith.constant 0 : i32
    return %c0_i32, %c0_i32_0, %c0_i32_1 : i32, i32, i32
  }
  func.func @transform_10(%arg0: i32) -> (i32, i32, i32) {
    %c0_i32 = arith.constant 0 : i32
    %c0_i32_0 = arith.constant 0 : i32
    %c0_i32_1 = arith.constant 0 : i32
    %c0_i32_2 = arith.constant 0 : i32
    return %c0_i32, %c0_i32_0, %c0_i32_1 : i32, i32, i32
  }
  func.func @transform_11(%arg0: i32) -> (i32, i32, i32, i32) {
    %c0_i32 = arith.constant 0 : i32
    %c0_i32_0 = arith.constant 0 : i32
    %c0_i32_1 = arith.constant 0 : i32
    %c0_i32_2 = arith.constant 0 : i32
    %c0_i32_3 = arith.constant 0 : i32
    return %c0_i32, %c0_i32_0, %c0_i32_1, %c0_i32_2 : i32, i32, i32, i32
  }
  func.func @transform_12(%arg0: i32) -> (i32, i32, i32) {
    %c0_i32 = arith.constant 0 : i32
    %c0_i32_0 = arith.constant 0 : i32
    %c0_i32_1 = arith.constant 0 : i32
    %c0_i32_2 = arith.constant 0 : i32
    return %c0_i32, %c0_i32_0, %c0_i32_1 : i32, i32, i32
  }
  func.func @transform_13(%arg0: i32) -> (i32, i32) {
    %c0_i32 = arith.constant 0 : i32
    %c0_i32_0 = arith.constant 0 : i32
    %c0_i32_1 = arith.constant 0 : i32
    return %c0_i32, %c0_i32_0 : i32, i32
  }
  func.func @transform_14(%arg0: i32) -> (i32, i32) {
    %c0_i32 = arith.constant 0 : i32
    %c0_i32_0 = arith.constant 0 : i32
    %c0_i32_1 = arith.constant 0 : i32
    return %c0_i32, %c0_i32_0 : i32, i32
  }
  func.func @transform_15(%arg0: i32) -> (i32, i32) {
    %c0_i32 = arith.constant 0 : i32
    %c0_i32_0 = arith.constant 0 : i32
    %c0_i32_1 = arith.constant 0 : i32
    return %c0_i32, %c0_i32_0 : i32, i32
  }
}

</mosaic_0001>

<llo_original>
// kernel: lanczosnet_forward.1
$region0: #{lanczosnet_forward.1}
  #allocation0 [shape = 'u32[]', space=smem, size = 0x4, offset = 0x4, fixed_abs, tag = 'smem constant byte address 0x4 - core index']
  #allocation1 [shape = 'u32[144,128]{1,0:T(1,128)}', space=vmem, size = 0x12000, scoped, tag = 'internal scratch']
  %s0 = inlined_call_operand.vmem [shape: f32[16,16], index: 0, kind: input, shape index: {}]
  %s1 = inlined_call_operand.vmem [shape: f32[16,8], index: 1, kind: input, shape index: {}]
  %s2 = inlined_call_operand.vmem [shape: f32[8,16], index: 2, kind: input, shape index: {}]
  %s3 = inlined_call_operand.hbm [shape: f32[8,8], index: 3, kind: input, shape index: {}]
  %s4 = inlined_call_operand.vmem [shape: f32[16,16], index: 4, kind: input, shape index: {}]
  %s5 = inlined_call_operand.vmem [shape: f32[16,128], index: 5, kind: input, shape index: {}]
  %s6 = inlined_call_operand.hbm [shape: f32[1,128], index: 6, kind: input, shape index: {}]
  %s7 = inlined_call_operand.vmem [shape: f32[2,8,16], index: 7, kind: input, shape index: {}]
  %s8 = inlined_call_operand.vmem [shape: f32[2,1,16], index: 8, kind: input, shape index: {}]
  %s9 = inlined_call_operand.vmem [shape: f32[2,16,8], index: 9, kind: input, shape index: {}]
  %s10 = inlined_call_operand.vmem [shape: f32[2,1,8], index: 10, kind: input, shape index: {}]
  %s11 = inlined_call_operand.hbm [shape: f32[2,5,128,128], index: 11, kind: input, shape index: {}]
  %s12 = inlined_call_operand.hbm [shape: f32[2,1,128], index: 12, kind: input, shape index: {}]
  %s13 = inlined_call_operand.hbm [shape: f32[128,128], index: 13, kind: input, shape index: {}]
  %s14 = inlined_call_operand.hbm [shape: f32[1,128], index: 14, kind: input, shape index: {}]
  %s15 = inlined_call_operand.vmem [shape: f32[16,128], index: 15, kind: output, shape index: {}]
  %s16 = sld [smem:[#allocation0]]
  $region94: #{lanczosnet_forward.1} parent=0
    _
  %s18 = ssub.s32 1, %s16
  %s19 = scalar_select 0, %s18, %s16
  $region1: #{lanczosnet_forward.1} parent=0
    #allocation2 [shape = 'u8[4096]{0}', space=vmem, size = 0x1000, scoped, tag = 'input window, operand 3, single buffered']
    #allocation3 [shape = 's32[1]{0}', space=sflag, size = 0x4, scoped, tag = 'scoped memory for lanczosnet_forward.1']
    #allocation4 [shape = 'u8[512]{0}', space=vmem, size = 0x400, scoped, tag = 'input window, operand 6, single buffered']
    #allocation5 [shape = 's32[1]{0}', space=sflag, size = 0x4, scoped, tag = 'scoped memory for lanczosnet_forward.1']
    #allocation6 [shape = 'u8[655360]{0}', space=vmem, size = 0xa0000, scoped, tag = 'input window, operand 11, single buffered']
    #allocation7 [shape = 'u8[1024]{0}', space=vmem, size = 0x400, scoped, tag = 'input window, operand 12, single buffered']
    #allocation8 [shape = 's32[1]{0}', space=sflag, size = 0x4, scoped, tag = 'scoped memory for lanczosnet_forward.1']
    #allocation9 [shape = 'u8[65536]{0}', space=vmem, size = 0x10000, scoped, tag = 'input window, operand 13, single buffered']
    #allocation10 [shape = 'u8[512]{0}', space=vmem, size = 0x400, scoped, tag = 'input window, operand 14, single buffered']
    #allocation11 [shape = 's32[1]{0}', space=sflag, size = 0x4, scoped, tag = 'scoped memory for lanczosnet_forward.1']
    %20 = vsyncpa [#allocation3], 0
    %21 = vsyncpa [#allocation5], 0
    %22 = vsyncpa [#allocation8], 0
    %23 = vsyncpa [#allocation11], 0
    // Predicated region
    $region2: #{lanczosnet_forward.1} parent=1 // pred_check
      _
    $region3: #{lanczosnet_forward.1} parent=1 // pred_check_branch
      %25 = sbr.rel (0) target = $region5
    $region4: #{lanczosnet_forward.1} parent=1 // pred_region
      _
    $region5: #{lanczosnet_forward.1} parent=1 // pred_fallthru
      _
    // Predicated region
    $region6: #{lanczosnet_forward.1} parent=1 // pred_check
      _
    $region7: #{lanczosnet_forward.1} parent=1 // pred_check_branch
      %27 = sbr.rel (0) target = $region9
    $region8: #{lanczosnet_forward.1} parent=1 // pred_region
      _
    $region9: #{lanczosnet_forward.1} parent=1 // pred_fallthru
      _
    // Predicated region
    $region10: #{lanczosnet_forward.1} parent=1 // pred_check
      _
    $region11: #{lanczosnet_forward.1} parent=1 // pred_check_branch
      %29 = sbr.rel (0) target = $region13
    $region12: #{lanczosnet_forward.1} parent=1 // pred_region
      _
    $region13: #{lanczosnet_forward.1} parent=1 // pred_fallthru
      _
    // Predicated region
    $region14: #{lanczosnet_forward.1} parent=1 // pred_check
      _
    $region15: #{lanczosnet_forward.1} parent=1 // pred_check_branch
      %31 = sbr.rel (0) target = $region17
    $region16: #{lanczosnet_forward.1} parent=1 // pred_region
      %s33 = ssub.s32 128, 128
      %34 = vsyncadd [#allocation3], %s33
      %s36 = sshll.u32 [#allocation2], 4
      %s37 = int_to_ptr.vmem [resolvable:$true] %s36
      %39 = dma.hbm_to_vmem [thread:$0]  %s3, 128, %s37, [#allocation3]
    $region17: #{lanczosnet_forward.1} parent=1 // pred_fallthru
      _
    // Predicated region
    $region18: #{lanczosnet_forward.1} parent=1 // pred_check
      _
    $region19: #{lanczosnet_forward.1} parent=1 // pred_check_branch
      %41 = sbr.rel (0) target = $region21
    $region20: #{lanczosnet_forward.1} parent=1 // pred_region
      _
    $region21: #{lanczosnet_forward.1} parent=1 // pred_fallthru
      _
    // Predicated region
    $region22: #{lanczosnet_forward.1} parent=1 // pred_check
      _
    $region23: #{lanczosnet_forward.1} parent=1 // pred_check_branch
      %43 = sbr.rel (0) target = $region25
    $region24: #{lanczosnet_forward.1} parent=1 // pred_region
      _
    $region25: #{lanczosnet_forward.1} parent=1 // pred_fallthru
      _
    // Predicated region
    $region26: #{lanczosnet_forward.1} parent=1 // pred_check
      _
    $region27: #{lanczosnet_forward.1} parent=1 // pred_check_branch
      %45 = sbr.rel (0) target = $region29
    $region28: #{lanczosnet_forward.1} parent=1 // pred_region
      %s47 = ssub.s32 16, 16
      %48 = vsyncadd [#allocation5], %s47
      %s50 = sshll.u32 [#allocation4], 4
      %s51 = int_to_ptr.vmem [resolvable:$true] %s50
      %53 = dma.hbm_to_vmem [thread:$0]  %s6, 16, %s51, [#allocation5]
    $region29: #{lanczosnet_forward.1} parent=1 // pred_fallthru
      _
    // Predicated region
    $region30: #{lanczosnet_forward.1} parent=1 // pred_check
      _
    $region31: #{lanczosnet_forward.1} parent=1 // pred_check_branch
      %55 = sbr.rel (0) target = $region33
    $region32: #{lanczosnet_forward.1} parent=1 // pred_region
      _
    $region33: #{lanczosnet_forward.1} parent=1 // pred_fallthru
      _
    // Predicated region
    $region34: #{lanczosnet_forward.1} parent=1 // pred_check
      _
    $region35: #{lanczosnet_forward.1} parent=1 // pred_check_branch
      %57 = sbr.rel (0) target = $region37
    $region36: #{lanczosnet_forward.1} parent=1 // pred_region
      _
    $region37: #{lanczosnet_forward.1} parent=1 // pred_fallthru
      _
    // Predicated region
    $region38: #{lanczosnet_forward.1} parent=1 // pred_check
      _
    $region39: #{lanczosnet_forward.1} parent=1 // pred_check_branch
      %59 = sbr.rel (0) target = $region41
    $region40: #{lanczosnet_forward.1} parent=1 // pred_region
      _
    $region41: #{lanczosnet_forward.1} parent=1 // pred_fallthru
      _
    // Predicated region
    $region42: #{lanczosnet_forward.1} parent=1 // pred_check
      _
    $region43: #{lanczosnet_forward.1} parent=1 // pred_check_branch
      %61 = sbr.rel (0) target = $region45
    $region44: #{lanczosnet_forward.1} parent=1 // pred_region
      _
    $region45: #{lanczosnet_forward.1} parent=1 // pred_fallthru
      _
    // Predicated region
    $region46: #{lanczosnet_forward.1} parent=1 // pred_check
      _
    $region47: #{lanczosnet_forward.1} parent=1 // pred_check_branch
      %63 = sbr.rel (0) target = $region49
    $region48: #{lanczosnet_forward.1} parent=1 // pred_region
      %s65 = ssub.s32 20480, 20480
      %66 = vsyncadd [#allocation5], %s65
      %s67 = sshll.u32 [#allocation6], 4
      %s68 = int_to_ptr.vmem [resolvable:$true] %s67
      %73 = dma.hbm_to_vmem [thread:$0]  %s11, 20480, %s68, [#allocation5], 128, 128, 8
    $region49: #{lanczosnet_forward.1} parent=1 // pred_fallthru
      _
    // Predicated region
    $region50: #{lanczosnet_forward.1} parent=1 // pred_check
      _
    $region51: #{lanczosnet_forward.1} parent=1 // pred_check_branch
      %75 = sbr.rel (0) target = $region53
    $region52: #{lanczosnet_forward.1} parent=1 // pred_region
      %s77 = ssub.s32 32, 32
      %78 = vsyncadd [#allocation8], %s77
      %s79 = sshll.u32 [#allocation7], 4
      %s80 = int_to_ptr.vmem [resolvable:$true] %s79
      %85 = dma.hbm_to_vmem [thread:$0]  %s12, 32, %s80, [#allocation8], 16, 16, 1
    $region53: #{lanczosnet_forward.1} parent=1 // pred_fallthru
      _
    // Predicated region
    $region54: #{lanczosnet_forward.1} parent=1 // pred_check
      _
    $region55: #{lanczosnet_forward.1} parent=1 // pred_check_branch
      %87 = sbr.rel (0) target = $region57
    $region56: #{lanczosnet_forward.1} parent=1 // pred_region
      %s89 = ssub.s32 2048, 2048
      %90 = vsyncadd [#allocation8], %s89
      %s91 = sshll.u32 [#allocation9], 4
      %s92 = int_to_ptr.vmem [resolvable:$true] %s91
      %97 = dma.hbm_to_vmem [thread:$0]  %s13, 2048, %s92, [#allocation8], 128, 128, 8
    $region57: #{lanczosnet_forward.1} parent=1 // pred_fallthru
      _
    // Predicated region
    $region58: #{lanczosnet_forward.1} parent=1 // pred_check
      _
    $region59: #{lanczosnet_forward.1} parent=1 // pred_check_branch
      %99 = sbr.rel (0) target = $region61
    $region60: #{lanczosnet_forward.1} parent=1 // pred_region
      %s101 = ssub.s32 16, 16
      %102 = vsyncadd [#allocation11], %s101
      %s104 = sshll.u32 [#allocation10], 4
      %s105 = int_to_ptr.vmem [resolvable:$true] %s104
      %107 = dma.hbm_to_vmem [thread:$0]  %s14, 16, %s105, [#allocation11]
    $region61: #{lanczosnet_forward.1} parent=1 // pred_fallthru
      _
    // Predicated region
    $region62: #{lanczosnet_forward.1} parent=1 // pred_check
      _
    $region63: #{lanczosnet_forward.1} parent=1 // pred_check_branch
      %109 = sbr.rel (0) target = $region65
    $region64: #{lanczosnet_forward.1} parent=1 // pred_region
      %110 = dma.done [#allocation3], 128
    $region65: #{lanczosnet_forward.1} parent=1 // pred_fallthru
      _
    // Predicated region
    $region66: #{lanczosnet_forward.1} parent=1 // pred_check
      _
    $region67: #{lanczosnet_forward.1} parent=1 // pred_check_branch
      %112 = sbr.rel (0) target = $region69
    $region68: #{lanczosnet_forward.1} parent=1 // pred_region
      %113 = dma.done [#allocation5], 16
    $region69: #{lanczosnet_forward.1} parent=1 // pred_fallthru
      _
    // Predicated region
    $region70: #{lanczosnet_forward.1} parent=1 // pred_check
      _
    $region71: #{lanczosnet_forward.1} parent=1 // pred_check_branch
      %115 = sbr.rel (0) target = $region73
    $region72: #{lanczosnet_forward.1} parent=1 // pred_region
      %116 = dma.done [#allocation5], 20480
    $region73: #{lanczosnet_forward.1} parent=1 // pred_fallthru
      _
    // Predicated region
    $region74: #{lanczosnet_forward.1} parent=1 // pred_check
      _
    $region75: #{lanczosnet_forward.1} parent=1 // pred_check_branch
      %118 = sbr.rel (0) target = $region77
    $region76: #{lanczosnet_forward.1} parent=1 // pred_region
      %119 = dma.done [#allocation8], 32
    $region77: #{lanczosnet_forward.1} parent=1 // pred_fallthru
      _
    // Predicated region
    $region78: #{lanczosnet_forward.1} parent=1 // pred_check
      _
    $region79: #{lanczosnet_forward.1} parent=1 // pred_check_branch
      %121 = sbr.rel (0) target = $region81
    $region80: #{lanczosnet_forward.1} parent=1 // pred_region
      %122 = dma.done [#allocation8], 2048
    $region81: #{lanczosnet_forward.1} parent=1 // pred_fallthru
      _
    // Predicated region
    $region82: #{lanczosnet_forward.1} parent=1 // pred_check
      _
    $region83: #{lanczosnet_forward.1} parent=1 // pred_check_branch
      %124 = sbr.rel (0) target = $region85
    $region84: #{lanczosnet_forward.1} parent=1 // pred_region
      %125 = dma.done [#allocation11], 16
    $region85: #{lanczosnet_forward.1} parent=1 // pred_fallthru
      _
    %v126 = vld [vmem:[%s0] sm:$0xff]
    %v127 = vld [vmem:[%s0 + $0x8] sm:$0xff]
    %v128 = vld [vmem:[%s1] sm:$0xff]
    %v129 = vld [vmem:[%s1 + $0x8] sm:$0xff]
    %v130 = vld [vmem:[%s2] sm:$0xff]
    %v131 = vld [vmem:[#allocation2] sm:$0xff]
    %v132 = vld [vmem:[%s4] sm:$0xff]
    %v133 = vld [vmem:[%s4 + $0x8] sm:$0xff]
    %v134 = vld [vmem:[%s5] sm:$0xff]
    %v135 = vld [vmem:[%s5 + $0x8] sm:$0xff]
    %v136 = vld [vmem:[#allocation4] sm:$0x1]
    %v138 = vlaneseq
    %v139 = vshrl.u32 %v138, 7
    %v140 = vsub.s32 0, %v139
    %v141 = vrot.slane %v136, %v140
    %vm143 = vcmask 130048
    %v145 = vsel %vm143, %v132, 0
    %v148 = vsel %vm143, %v133, 0
    %150 = vmatprep.subr.mxu0 0.0
    %151 = vmatpush1.msra.mxu0 %v134
    %152 = vmatprep.subr.mxu0 0.0
    %153 = vmatpush1.msra.mxu0 %v135
    %154 = vmatprep.subr.mxu0 0.0
    %155 = vmatpush1.msra.mxu0 0.0
    %156 = vmatprep.subr.mxu0 0.0
    %157 = vmatpush1.msra.mxu0 0.0
    %158 = vmatprep.subr.mxu0 0.0
    %159 = vmatpush1.msra.mxu0 0.0
    %160 = vmatprep.subr.mxu0 0.0
    %161 = vmatpush1.msra.mxu0 0.0
    %162 = vmatprep.subr.mxu0 0.0
    %163 = vmatpush1.msra.mxu0 0.0
    %164 = vmatprep.subr.mxu0 0.0
    %165 = vmatpush1.msra.mxu0 0.0
    %166 = vmatprep.subr.mxu0 0.0
    %167 = vmatpush1.msra.mxu0 0.0
    %168 = vmatprep.subr.mxu0 0.0
    %169 = vmatpush1.msra.mxu0 0.0
    %170 = vmatprep.subr.mxu0 0.0
    %171 = vmatpush1.msra.mxu0 0.0
    %172 = vmatprep.subr.mxu0 0.0
    %173 = vmatpush1.msra.mxu0 0.0
    %174 = vmatprep.subr.mxu0 0.0
    %175 = vmatpush1.msra.mxu0 0.0
    %176 = vmatprep.subr.mxu0 0.0
    %177 = vmatpush1.msra.mxu0 0.0
    %178 = vmatprep.subr.mxu0 0.0
    %179 = vmatpush1.msra.mxu0 0.0
    %180 = vmatprep.subr.mxu0 0.0
    %181 = vmatpush1.msra.mxu0 0.0
    %182 = vmatprep.subr.mxu0 0.0
    %183 = vmatpush1.msra.mxu0 0.0
    %184 = vmatprep.subr.mxu0 0.0
    %185 = vmatpush1.msra.mxu0 0.0
    %186 = vmatprep.subr.mxu0 0.0
    %187 = vmatpush1.msra.mxu0 0.0
    %188 = vmatprep.subr.mxu0 0.0
    %189 = vmatpush1.msra.mxu0 0.0
    %190 = vmatprep.subr.mxu0 0.0
    %191 = vmatpush1.msra.mxu0 0.0
    %192 = vmatprep.subr.mxu0 0.0
    %193 = vmatpush1.msra.mxu0 0.0
    %194 = vmatprep.subr.mxu0 0.0
    %195 = vmatpush1.msra.mxu0 0.0
    %196 = vmatprep.subr.mxu0 0.0
    %197 = vmatpush1.msra.mxu0 0.0
    %198 = vmatprep.subr.mxu0 0.0
    %199 = vmatpush1.msra.mxu0 0.0
    %200 = vmatprep.subr.mxu0 0.0
    %201 = vmatpush1.msra.mxu0 0.0
    %202 = vmatprep.subr.mxu0 0.0
    %203 = vmatpush1.msra.mxu0 0.0
    %204 = vmatprep.subr.mxu0 0.0
    %205 = vmatpush1.msra.mxu0 0.0
    %206 = vmatprep.subr.mxu0 0.0
    %207 = vmatpush1.msra.mxu0 0.0
    %208 = vmatprep.subr.mxu0 0.0
    %209 = vmatpush1.msra.mxu0 0.0
    %210 = vmatprep.subr.mxu0 0.0
    %211 = vmatpush1.msra.mxu0 0.0
    %212 = vmatprep.subr.mxu0 0.0
    %213 = vmatpush1.msra.mxu0 0.0
    %214 = vmatprep.mubr.f32.mxu0 0.0
    %215 = vmatmul.mubr.f32.gmra.mrb[0].mxu0 %v145
    %v216 = vpop.f32.mrb[0].mxu0
    %v217 = vadd.f32 %v141, %v216
    %v218 = vpop.f32.mrb[0].mxu0
    %219 = vmatprep.mubr.f32.mxu0 0.0
    %220 = vmatmul.mubr.f32.gmra.mrb[0].mxu0 %v148
    %v221 = vpop.f32.mrb[0].mxu0
    %v222 = vadd.f32 %v141, %v221
    %v223 = vpop.f32.mrb[0].mxu0
    %224 = vdwg.mxu0
    %v225 = vld [vmem:[%s7] sm:$0xff]
    %v226 = vld [vmem:[%s8] sm:$0x1]
    %v228 = vlaneseq
    %v229 = vshrl.u32 %v228, 7
    %v230 = vsub.s32 0, %v229
    %v231 = vrot.slane %v226, %v230
    %vm233 = vcmask 64512
    %v235 = vsel %vm233, %v131, 0
    %237 = vmatprep.subr.mxu0 0.0
    %238 = vmatpush1.msra.mxu0 %v225
    %239 = vmatprep.subr.mxu0 0.0
    %240 = vmatpush1.msra.mxu0 0.0
    %241 = vmatprep.subr.mxu0 0.0
    %242 = vmatpush1.msra.mxu0 0.0
    %243 = vmatprep.subr.mxu0 0.0
    %244 = vmatpush1.msra.mxu0 0.0
    %245 = vmatprep.subr.mxu0 0.0
    %246 = vmatpush1.msra.mxu0 0.0
    %247 = vmatprep.subr.mxu0 0.0
    %248 = vmatpush1.msra.mxu0 0.0
    %249 = vmatprep.subr.mxu0 0.0
    %250 = vmatpush1.msra.mxu0 0.0
    %251 = vmatprep.subr.mxu0 0.0
    %252 = vmatpush1.msra.mxu0 0.0
    %253 = vmatprep.subr.mxu0 0.0
    %254 = vmatpush1.msra.mxu0 0.0
    %255 = vmatprep.subr.mxu0 0.0
    %256 = vmatpush1.msra.mxu0 0.0
    %257 = vmatprep.subr.mxu0 0.0
    %258 = vmatpush1.msra.mxu0 0.0
    %259 = vmatprep.subr.mxu0 0.0
    %260 = vmatpush1.msra.mxu0 0.0
    %261 = vmatprep.subr.mxu0 0.0
    %262 = vmatpush1.msra.mxu0 0.0
    %263 = vmatprep.subr.mxu0 0.0
    %264 = vmatpush1.msra.mxu0 0.0
    %265 = vmatprep.subr.mxu0 0.0
    %266 = vmatpush1.msra.mxu0 0.0
    %267 = vmatprep.subr.mxu0 0.0
    %268 = vmatpush1.msra.mxu0 0.0
    %269 = vmatprep.subr.mxu0 0.0
    %270 = vmatpush1.msra.mxu0 0.0
    %271 = vmatprep.subr.mxu0 0.0
    %272 = vmatpush1.msra.mxu0 0.0
    %273 = vmatprep.subr.mxu0 0.0
    %274 = vmatpush1.msra.mxu0 0.0
    %275 = vmatprep.subr.mxu0 0.0
    %276 = vmatpush1.msra.mxu0 0.0
    %277 = vmatprep.subr.mxu0 0.0
    %278 = vmatpush1.msra.mxu0 0.0
    %279 = vmatprep.subr.mxu0 0.0
    %280 = vmatpush1.msra.mxu0 0.0
    %281 = vmatprep.subr.mxu0 0.0
    %282 = vmatpush1.msra.mxu0 0.0
    %283 = vmatprep.subr.mxu0 0.0
    %284 = vmatpush1.msra.mxu0 0.0
    %285 = vmatprep.subr.mxu0 0.0
    %286 = vmatpush1.msra.mxu0 0.0
    %287 = vmatprep.subr.mxu0 0.0
    %288 = vmatpush1.msra.mxu0 0.0
    %289 = vmatprep.subr.mxu0 0.0
    %290 = vmatpush1.msra.mxu0 0.0
    %291 = vmatprep.subr.mxu0 0.0
    %292 = vmatpush1.msra.mxu0 0.0
    %293 = vmatprep.subr.mxu0 0.0
    %294 = vmatpush1.msra.mxu0 0.0
    %295 = vmatprep.subr.mxu0 0.0
    %296 = vmatpush1.msra.mxu0 0.0
    %297 = vmatprep.subr.mxu0 0.0
    %298 = vmatpush1.msra.mxu0 0.0
    %299 = vmatprep.subr.mxu0 0.0
    %300 = vmatpush1.msra.mxu0 0.0
    %301 = vmatprep.mubr.f32.mxu0 0.0
    %302 = vmatmul.mubr.f32.gmra.mrb[0].mxu0 %v235
    %v303 = vpop.f32.mrb[0].mxu0
    %v304 = vadd.f32 %v231, %v303
    %v305 = vpop.f32.mrb[0].mxu0
    %306 = vdwg.mxu0
    %v307 = vmax.f32 %v304, 0.0
    %v308 = vld [vmem:[%s9] sm:$0xff]
    %v309 = vld [vmem:[%s9 + $0x8] sm:$0xff]
    %v310 = vld [vmem:[%s10] sm:$0x1]
    %v312 = vlaneseq
    %v313 = vshrl.u32 %v312, 7
    %v314 = vsub.s32 0, %v313
    %v315 = vrot.slane %v310, %v314
    %v318 = vsel %vm143, %v307, 0
    %320 = vmatprep.subr.mxu0 0.0
    %321 = vmatpush1.msra.mxu0 %v308
    %322 = vmatprep.subr.mxu0 0.0
    %323 = vmatpush1.msra.mxu0 %v309
    %324 = vmatprep.subr.mxu0 0.0
    %325 = vmatpush1.msra.mxu0 0.0
    %326 = vmatprep.subr.mxu0 0.0
    %327 = vmatpush1.msra.mxu0 0.0
    %328 = vmatprep.subr.mxu0 0.0
    %329 = vmatpush1.msra.mxu0 0.0
    %330 = vmatprep.subr.mxu0 0.0
    %331 = vmatpush1.msra.mxu0 0.0
    %332 = vmatprep.subr.mxu0 0.0
    %333 = vmatpush1.msra.mxu0 0.0
    %334 = vmatprep.subr.mxu0 0.0
    %335 = vmatpush1.msra.mxu0 0.0
    %336 = vmatprep.subr.mxu0 0.0
    %337 = vmatpush1.msra.mxu0 0.0
    %338 = vmatprep.subr.mxu0 0.0
    %339 = vmatpush1.msra.mxu0 0.0
    %340 = vmatprep.subr.mxu0 0.0
    %341 = vmatpush1.msra.mxu0 0.0
    %342 = vmatprep.subr.mxu0 0.0
    %343 = vmatpush1.msra.mxu0 0.0
    %344 = vmatprep.subr.mxu0 0.0
    %345 = vmatpush1.msra.mxu0 0.0
    %346 = vmatprep.subr.mxu0 0.0
    %347 = vmatpush1.msra.mxu0 0.0
    %348 = vmatprep.subr.mxu0 0.0
    %349 = vmatpush1.msra.mxu0 0.0
    %350 = vmatprep.subr.mxu0 0.0
    %351 = vmatpush1.msra.mxu0 0.0
    %352 = vmatprep.subr.mxu0 0.0
    %353 = vmatpush1.msra.mxu0 0.0
    %354 = vmatprep.subr.mxu0 0.0
    %355 = vmatpush1.msra.mxu0 0.0
    %356 = vmatprep.subr.mxu0 0.0
    %357 = vmatpush1.msra.mxu0 0.0
    %358 = vmatprep.subr.mxu0 0.0
    %359 = vmatpush1.msra.mxu0 0.0
    %360 = vmatprep.subr.mxu0 0.0
    %361 = vmatpush1.msra.mxu0 0.0
    %362 = vmatprep.subr.mxu0 0.0
    %363 = vmatpush1.msra.mxu0 0.0
    %364 = vmatprep.subr.mxu0 0.0
    %365 = vmatpush1.msra.mxu0 0.0
    %366 = vmatprep.subr.mxu0 0.0
    %367 = vmatpush1.msra.mxu0 0.0
    %368 = vmatprep.subr.mxu0 0.0
    %369 = vmatpush1.msra.mxu0 0.0
    %370 = vmatprep.subr.mxu0 0.0
    %371 = vmatpush1.msra.mxu0 0.0
    %372 = vmatprep.subr.mxu0 0.0
    %373 = vmatpush1.msra.mxu0 0.0
    %374 = vmatprep.subr.mxu0 0.0
    %375 = vmatpush1.msra.mxu0 0.0
    %376 = vmatprep.subr.mxu0 0.0
    %377 = vmatpush1.msra.mxu0 0.0
    %378 = vmatprep.subr.mxu0 0.0
    %379 = vmatpush1.msra.mxu0 0.0
    %380 = vmatprep.subr.mxu0 0.0
    %381 = vmatpush1.msra.mxu0 0.0
    %382 = vmatprep.subr.mxu0 0.0
    %383 = vmatpush1.msra.mxu0 0.0
    %384 = vmatprep.mubr.f32.mxu0 0.0
    %385 = vmatmul.mubr.f32.gmra.mrb[0].mxu0 %v318
    %v386 = vpop.f32.mrb[0].mxu0
    %v387 = vadd.f32 %v315, %v386
    %v388 = vpop.f32.mrb[0].mxu0
    %389 = vdwg.mxu0
    %v391 = vsel %vm143, %v126, 0
    %v394 = vsel %vm143, %v127, 0
    %396 = vmatprep.subr.mxu0 0.0
    %397 = vmatpush1.msra.mxu0 %v217
    %398 = vmatprep.subr.mxu0 0.0
    %399 = vmatpush1.msra.mxu0 %v222
    %400 = vmatprep.subr.mxu0 0.0
    %401 = vmatpush1.msra.mxu0 0.0
    %402 = vmatprep.subr.mxu0 0.0
    %403 = vmatpush1.msra.mxu0 0.0
    %404 = vmatprep.subr.mxu0 0.0
    %405 = vmatpush1.msra.mxu0 0.0
    %406 = vmatprep.subr.mxu0 0.0
    %407 = vmatpush1.msra.mxu0 0.0
    %408 = vmatprep.subr.mxu0 0.0
    %409 = vmatpush1.msra.mxu0 0.0
    %410 = vmatprep.subr.mxu0 0.0
    %411 = vmatpush1.msra.mxu0 0.0
    %412 = vmatprep.subr.mxu0 0.0
    %413 = vmatpush1.msra.mxu0 0.0
    %414 = vmatprep.subr.mxu0 0.0
    %415 = vmatpush1.msra.mxu0 0.0
    %416 = vmatprep.subr.mxu0 0.0
    %417 = vmatpush1.msra.mxu0 0.0
    %418 = vmatprep.subr.mxu0 0.0
    %419 = vmatpush1.msra.mxu0 0.0
    %420 = vmatprep.subr.mxu0 0.0
    %421 = vmatpush1.msra.mxu0 0.0
    %422 = vmatprep.subr.mxu0 0.0
    %423 = vmatpush1.msra.mxu0 0.0
    %424 = vmatprep.subr.mxu0 0.0
    %425 = vmatpush1.msra.mxu0 0.0
    %426 = vmatprep.subr.mxu0 0.0
    %427 = vmatpush1.msra.mxu0 0.0
    %428 = vmatprep.subr.mxu0 0.0
    %429 = vmatpush1.msra.mxu0 0.0
    %430 = vmatprep.subr.mxu0 0.0
    %431 = vmatpush1.msra.mxu0 0.0
    %432 = vmatprep.subr.mxu0 0.0
    %433 = vmatpush1.msra.mxu0 0.0
    %434 = vmatprep.subr.mxu0 0.0
    %435 = vmatpush1.msra.mxu0 0.0
    %436 = vmatprep.subr.mxu0 0.0
    %437 = vmatpush1.msra.mxu0 0.0
    %438 = vmatprep.subr.mxu0 0.0
    %439 = vmatpush1.msra.mxu0 0.0
    %440 = vmatprep.subr.mxu0 0.0
    %441 = vmatpush1.msra.mxu0 0.0
    %442 = vmatprep.subr.mxu0 0.0
    %443 = vmatpush1.msra.mxu0 0.0
    %444 = vmatprep.subr.mxu0 0.0
    %445 = vmatpush1.msra.mxu0 0.0
    %446 = vmatprep.subr.mxu0 0.0
    %447 = vmatpush1.msra.mxu0 0.0
    %448 = vmatprep.subr.mxu0 0.0
    %449 = vmatpush1.msra.mxu0 0.0
    %450 = vmatprep.subr.mxu0 0.0
    %451 = vmatpush1.msra.mxu0 0.0
    %452 = vmatprep.subr.mxu0 0.0
    %453 = vmatpush1.msra.mxu0 0.0
    %454 = vmatprep.subr.mxu0 0.0
    %455 = vmatpush1.msra.mxu0 0.0
    %456 = vmatprep.subr.mxu0 0.0
    %457 = vmatpush1.msra.mxu0 0.0
    %458 = vmatprep.subr.mxu0 0.0
    %459 = vmatpush1.msra.mxu0 0.0
    %460 = vmatprep.mubr.f32.mxu0 0.0
    %461 = vmatmul.mubr.f32.gmra.mrb[0].mxu0 %v391
    %v462 = vpop.f32.mrb[0].mxu0
    %v463 = vadd.f32 0.0, %v462
    %v464 = vpop.f32.mrb[0].mxu0
    %465 = vmatprep.mubr.f32.mxu0 0.0
    %466 = vmatmul.mubr.f32.gmra.mrb[0].mxu0 %v394
    %v467 = vpop.f32.mrb[0].mxu0
    %v468 = vadd.f32 0.0, %v467
    %v469 = vpop.f32.mrb[0].mxu0
    %470 = vdwg.mxu0
    %v471 = vld [vmem:[#allocation6] sm:$0xff]
    %v472 = vld [vmem:[#allocation6 + $0x8] sm:$0xff]
    %v473 = vld [vmem:[#allocation6 + $0x10] sm:$0xff]
    %v474 = vld [vmem:[#allocation6 + $0x18] sm:$0xff]
    %v475 = vld [vmem:[#allocation6 + $0x20] sm:$0xff]
    %v476 = vld [vmem:[#allocation6 + $0x28] sm:$0xff]
    %v477 = vld [vmem:[#allocation6 + $0x30] sm:$0xff]
    %v478 = vld [vmem:[#allocation6 + $0x38] sm:$0xff]
    %v479 = vld [vmem:[#allocation6 + $0x40] sm:$0xff]
    %v480 = vld [vmem:[#allocation6 + $0x48] sm:$0xff]
    %v481 = vld [vmem:[#allocation6 + $0x50] sm:$0xff]
    %v482 = vld [vmem:[#allocation6 + $0x58] sm:$0xff]
    %v483 = vld [vmem:[#allocation6 + $0x60] sm:$0xff]
    %v484 = vld [vmem:[#allocation6 + $0x68] sm:$0xff]
    %v485 = vld [vmem:[#allocation6 + $0x70] sm:$0xff]
    %v486 = vld [vmem:[#allocation6 + $0x78] sm:$0xff]
    %487 = vmatprep.subr.mxu0 0.0
    %488 = vmatpush1.msra.mxu0 %v463
    %489 = vmatprep.subr.mxu0 0.0
    %490 = vmatpush1.msra.mxu0 %v468
    %491 = vmatprep.subr.mxu0 0.0
    %492 = vmatpush1.msra.mxu0 0.0
    %493 = vmatprep.subr.mxu0 0.0
    %494 = vmatpush1.msra.mxu0 0.0
    %495 = vmatprep.subr.mxu0 0.0
    %496 = vmatpush1.msra.mxu0 0.0
    %497 = vmatprep.subr.mxu0 0.0
    %498 = vmatpush1.msra.mxu0 0.0
    %499 = vmatprep.subr.mxu0 0.0
    %500 = vmatpush1.msra.mxu0 0.0
    %501 = vmatprep.subr.mxu0 0.0
    %502 = vmatpush1.msra.mxu0 0.0
    %503 = vmatprep.subr.mxu0 0.0
    %504 = vmatpush1.msra.mxu0 0.0
    %505 = vmatprep.subr.mxu0 0.0
    %506 = vmatpush1.msra.mxu0 0.0
    %507 = vmatprep.subr.mxu0 0.0
    %508 = vmatpush1.msra.mxu0 0.0
    %509 = vmatprep.subr.mxu0 0.0
    %510 = vmatpush1.msra.mxu0 0.0
    %511 = vmatprep.subr.mxu0 0.0
    %512 = vmatpush1.msra.mxu0 0.0
    %513 = vmatprep.subr.mxu0 0.0
    %514 = vmatpush1.msra.mxu0 0.0
    %515 = vmatprep.subr.mxu0 0.0
    %516 = vmatpush1.msra.mxu0 0.0
    %517 = vmatprep.subr.mxu0 0.0
    %518 = vmatpush1.msra.mxu0 0.0
    %519 = vmatprep.subr.mxu0 0.0
    %520 = vmatpush1.msra.mxu0 0.0
    %521 = vmatprep.subr.mxu0 0.0
    %522 = vmatpush1.msra.mxu0 0.0
    %523 = vmatprep.subr.mxu0 0.0
    %524 = vmatpush1.msra.mxu0 0.0
    %525 = vmatprep.subr.mxu0 0.0
    %526 = vmatpush1.msra.mxu0 0.0
    %527 = vmatprep.subr.mxu0 0.0
    %528 = vmatpush1.msra.mxu0 0.0
    %529 = vmatprep.subr.mxu0 0.0
    %530 = vmatpush1.msra.mxu0 0.0
    %531 = vmatprep.subr.mxu0 0.0
    %532 = vmatpush1.msra.mxu0 0.0
    %533 = vmatprep.subr.mxu0 0.0
    %534 = vmatpush1.msra.mxu0 0.0
    %535 = vmatprep.subr.mxu0 0.0
    %536 = vmatpush1.msra.mxu0 0.0
    %537 = vmatprep.subr.mxu0 0.0
    %538 = vmatpush1.msra.mxu0 0.0
    %539 = vmatprep.subr.mxu0 0.0
    %540 = vmatpush1.msra.mxu0 0.0
    %541 = vmatprep.subr.mxu0 0.0
    %542 = vmatpush1.msra.mxu0 0.0
    %543 = vmatprep.subr.mxu0 0.0
    %544 = vmatpush1.msra.mxu0 0.0
    %545 = vmatprep.subr.mxu0 0.0
    %546 = vmatpush1.msra.mxu0 0.0
    %547 = vmatprep.subr.mxu0 0.0
    %548 = vmatpush1.msra.mxu0 0.0
    %549 = vmatprep.subr.mxu0 0.0
    %550 = vmatpush1.msra.mxu0 0.0
    %551 = vmatprep.mubr.f32.mxu0 0.0
    %552 = vmatmul.mubr.f32.gmra.mrb[0].mxu0 %v391
    %v553 = vpop.f32.mrb[0].mxu0
    %v554 = vadd.f32 0.0, %v553
    %v555 = vpop.f32.mrb[0].mxu0
    %556 = vmatprep.mubr.f32.mxu0 0.0
    %557 = vmatmul.mubr.f32.gmra.mrb[0].mxu0 %v394
    %v558 = vpop.f32.mrb[0].mxu0
    %v559 = vadd.f32 0.0, %v558
    %v560 = vpop.f32.mrb[0].mxu0
    %561 = vdwg.mxu0
    %s562 = scalar_lea.vmem [#allocation6], 128
    %v563 = vld [vmem:[%s562] sm:$0xff]
    %v564 = vld [vmem:[%s562 + $0x8] sm:$0xff]
    %v565 = vld [vmem:[%s562 + $0x10] sm:$0xff]
    %v566 = vld [vmem:[%s562 + $0x18] sm:$0xff]
    %v567 = vld [vmem:[%s562 + $0x20] sm:$0xff]
    %v568 = vld [vmem:[%s562 + $0x28] sm:$0xff]
    %v569 = vld [vmem:[%s562 + $0x30] sm:$0xff]
    %v570 = vld [vmem:[%s562 + $0x38] sm:$0xff]
    %v571 = vld [vmem:[%s562 + $0x40] sm:$0xff]
    %v572 = vld [vmem:[%s562 + $0x48] sm:$0xff]
    %v573 = vld [vmem:[%s562 + $0x50] sm:$0xff]
    %v574 = vld [vmem:[%s562 + $0x58] sm:$0xff]
    %v575 = vld [vmem:[%s562 + $0x60] sm:$0xff]
    %v576 = vld [vmem:[%s562 + $0x68] sm:$0xff]
    %v577 = vld [vmem:[%s562 + $0x70] sm:$0xff]
    %v578 = vld [vmem:[%s562 + $0x78] sm:$0xff]
    %579 = vmatprep.subr.mxu0 0.0
    %580 = vmatpush1.msra.mxu0 %v563
    %581 = vmatprep.subr.mxu0 0.0
    %582 = vmatpush1.msra.mxu0 %v564
    %583 = vmatprep.subr.mxu0 0.0
    %584 = vmatpush1.msra.mxu0 %v565
    %585 = vmatprep.subr.mxu0 0.0
    %586 = vmatpush1.msra.mxu0 %v566
    %587 = vmatprep.subr.mxu0 0.0
    %588 = vmatpush1.msra.mxu0 %v567
    %589 = vmatprep.subr.mxu0 0.0
    %590 = vmatpush1.msra.mxu0 %v568
    %591 = vmatprep.subr.mxu0 0.0
    %592 = vmatpush1.msra.mxu0 %v569
    %593 = vmatprep.subr.mxu0 0.0
    %594 = vmatpush1.msra.mxu0 %v570
    %595 = vmatprep.subr.mxu0 0.0
    %596 = vmatpush1.msra.mxu0 %v571
    %597 = vmatprep.subr.mxu0 0.0
    %598 = vmatpush1.msra.mxu0 %v572
    %599 = vmatprep.subr.mxu0 0.0
    %600 = vmatpush1.msra.mxu0 %v573
    %601 = vmatprep.subr.mxu0 0.0
    %602 = vmatpush1.msra.mxu0 %v574
    %603 = vmatprep.subr.mxu0 0.0
    %604 = vmatpush1.msra.mxu0 %v575
    %605 = vmatprep.subr.mxu0 0.0
    %606 = vmatpush1.msra.mxu0 %v576
    %607 = vmatprep.subr.mxu0 0.0
    %608 = vmatpush1.msra.mxu0 %v577
    %609 = vmatprep.subr.mxu0 0.0
    %610 = vmatpush1.msra.mxu0 %v578
    %611 = vmatprep.subr.mxu0 0.0
    %612 = vmatpush1.msra.mxu0 0.0
    %613 = vmatprep.subr.mxu0 0.0
    %614 = vmatpush1.msra.mxu0 0.0
    %615 = vmatprep.subr.mxu0 0.0
    %616 = vmatpush1.msra.mxu0 0.0
    %617 = vmatprep.subr.mxu0 0.0
    %618 = vmatpush1.msra.mxu0 0.0
    %619 = vmatprep.subr.mxu0 0.0
    %620 = vmatpush1.msra.mxu0 0.0
    %621 = vmatprep.subr.mxu0 0.0
    %622 = vmatpush1.msra.mxu0 0.0
    %623 = vmatprep.subr.mxu0 0.0
    %624 = vmatpush1.msra.mxu0 0.0
    %625 = vmatprep.subr.mxu0 0.0
    %626 = vmatpush1.msra.mxu0 0.0
    %627 = vmatprep.subr.mxu0 0.0
    %628 = vmatpush1.msra.mxu0 0.0
    %629 = vmatprep.subr.mxu0 0.0
    %630 = vmatpush1.msra.mxu0 0.0
    %631 = vmatprep.subr.mxu0 0.0
    %632 = vmatpush1.msra.mxu0 0.0
    %633 = vmatprep.subr.mxu0 0.0
    %634 = vmatpush1.msra.mxu0 0.0
    %635 = vmatprep.subr.mxu0 0.0
    %636 = vmatpush1.msra.mxu0 0.0
    %637 = vmatprep.subr.mxu0 0.0
    %638 = vmatpush1.msra.mxu0 0.0
    %639 = vmatprep.subr.mxu0 0.0
    %640 = vmatpush1.msra.mxu0 0.0
    %641 = vmatprep.subr.mxu0 0.0
    %642 = vmatpush1.msra.mxu0 0.0
    %643 = vmatprep.mubr.f32.mxu0 0.0
    %644 = vmatmul.mubr.f32.gmra.mrb[0].mxu0 %v554
    %v645 = vpop.f32.mrb[0].mxu0
    %v646 = vadd.f32 0.0, %v645
    %v647 = vpop.f32.mrb[0].mxu0
    %648 = vmatprep.mubr.f32.mxu0 0.0
    %649 = vmatmul.mubr.f32.gmra.mrb[0].mxu0 %v559
    %v650 = vpop.f32.mrb[0].mxu0
    %v651 = vadd.f32 0.0, %v650
    %v652 = vpop.f32.mrb[0].mxu0
    %653 = vdwg.mxu0
    %654 = vmatprep.subr.mxu0 0.0
    %655 = vmatpush1.msra.mxu0 %v471
    %656 = vmatprep.subr.mxu0 0.0
    %657 = vmatpush1.msra.mxu0 %v472
    %658 = vmatprep.subr.mxu0 0.0
    %659 = vmatpush1.msra.mxu0 %v473
    %660 = vmatprep.subr.mxu0 0.0
    %661 = vmatpush1.msra.mxu0 %v474
    %662 = vmatprep.subr.mxu0 0.0
    %663 = vmatpush1.msra.mxu0 %v475
    %664 = vmatprep.subr.mxu0 0.0
    %665 = vmatpush1.msra.mxu0 %v476
    %666 = vmatprep.subr.mxu0 0.0
    %667 = vmatpush1.msra.mxu0 %v477
    %668 = vmatprep.subr.mxu0 0.0
    %669 = vmatpush1.msra.mxu0 %v478
    %670 = vmatprep.subr.mxu0 0.0
    %671 = vmatpush1.msra.mxu0 %v479
    %672 = vmatprep.subr.mxu0 0.0
    %673 = vmatpush1.msra.mxu0 %v480
    %674 = vmatprep.subr.mxu0 0.0
    %675 = vmatpush1.msra.mxu0 %v481
    %676 = vmatprep.subr.mxu0 0.0
    %677 = vmatpush1.msra.mxu0 %v482
    %678 = vmatprep.subr.mxu0 0.0
    %679 = vmatpush1.msra.mxu0 %v483
    %680 = vmatprep.subr.mxu0 0.0
    %681 = vmatpush1.msra.mxu0 %v484
    %682 = vmatprep.subr.mxu0 0.0
    %683 = vmatpush1.msra.mxu0 %v485
    %684 = vmatprep.subr.mxu0 0.0
    %685 = vmatpush1.msra.mxu0 %v486
    %686 = vmatprep.subr.mxu0 0.0
    %687 = vmatpush1.msra.mxu0 0.0
    %688 = vmatprep.subr.mxu0 0.0
    %689 = vmatpush1.msra.mxu0 0.0
    %690 = vmatprep.subr.mxu0 0.0
    %691 = vmatpush1.msra.mxu0 0.0
    %692 = vmatprep.subr.mxu0 0.0
    %693 = vmatpush1.msra.mxu0 0.0
    %694 = vmatprep.subr.mxu0 0.0
    %695 = vmatpush1.msra.mxu0 0.0
    %696 = vmatprep.subr.mxu0 0.0
    %697 = vmatpush1.msra.mxu0 0.0
    %698 = vmatprep.subr.mxu0 0.0
    %699 = vmatpush1.msra.mxu0 0.0
    %700 = vmatprep.subr.mxu0 0.0
    %701 = vmatpush1.msra.mxu0 0.0
    %702 = vmatprep.subr.mxu0 0.0
    %703 = vmatpush1.msra.mxu0 0.0
    %704 = vmatprep.subr.mxu0 0.0
    %705 = vmatpush1.msra.mxu0 0.0
    %706 = vmatprep.subr.mxu0 0.0
    %707 = vmatpush1.msra.mxu0 0.0
    %708 = vmatprep.subr.mxu0 0.0
    %709 = vmatpush1.msra.mxu0 0.0
    %710 = vmatprep.subr.mxu0 0.0
    %711 = vmatpush1.msra.mxu0 0.0
    %712 = vmatprep.subr.mxu0 0.0
    %713 = vmatpush1.msra.mxu0 0.0
    %714 = vmatprep.subr.mxu0 0.0
    %715 = vmatpush1.msra.mxu0 0.0
    %716 = vmatprep.subr.mxu0 0.0
    %717 = vmatpush1.msra.mxu0 0.0
    %718 = vmatprep.mubr.f32.mxu0 0.0
    %719 = vmatmul.mubr.f32.gmra.mrb[0].mxu0 %v463
    %v720 = vpop.f32.mrb[0].mxu0
    %v721 = vadd.f32 %v646, %v720
    %v722 = vpop.f32.mrb[0].mxu0
    %723 = vmatprep.mubr.f32.mxu0 0.0
    %724 = vmatmul.mubr.f32.gmra.mrb[0].mxu0 %v468
    %v725 = vpop.f32.mrb[0].mxu0
    %v726 = vadd.f32 %v651, %v725
    %v727 = vpop.f32.mrb[0].mxu0
    %728 = vdwg.mxu0
    %v730 = vsel %vm143, %v130, 0
    %732 = vmatprep.subr.mxu0 0.0
    %733 = vmatpush1.msra.mxu0 %v217
    %734 = vmatprep.subr.mxu0 0.0
    %735 = vmatpush1.msra.mxu0 %v222
    %736 = vmatprep.subr.mxu0 0.0
    %737 = vmatpush1.msra.mxu0 0.0
    %738 = vmatprep.subr.mxu0 0.0
    %739 = vmatpush1.msra.mxu0 0.0
    %740 = vmatprep.subr.mxu0 0.0
    %741 = vmatpush1.msra.mxu0 0.0
    %742 = vmatprep.subr.mxu0 0.0
    %743 = vmatpush1.msra.mxu0 0.0
    %744 = vmatprep.subr.mxu0 0.0
    %745 = vmatpush1.msra.mxu0 0.0
    %746 = vmatprep.subr.mxu0 0.0
    %747 = vmatpush1.msra.mxu0 0.0
    %748 = vmatprep.subr.mxu0 0.0
    %749 = vmatpush1.msra.mxu0 0.0
    %750 = vmatprep.subr.mxu0 0.0
    %751 = vmatpush1.msra.mxu0 0.0
    %752 = vmatprep.subr.mxu0 0.0
    %753 = vmatpush1.msra.mxu0 0.0
    %754 = vmatprep.subr.mxu0 0.0
    %755 = vmatpush1.msra.mxu0 0.0
    %756 = vmatprep.subr.mxu0 0.0
    %757 = vmatpush1.msra.mxu0 0.0
    %758 = vmatprep.subr.mxu0 0.0
    %759 = vmatpush1.msra.mxu0 0.0
    %760 = vmatprep.subr.mxu0 0.0
    %761 = vmatpush1.msra.mxu0 0.0
    %762 = vmatprep.subr.mxu0 0.0
    %763 = vmatpush1.msra.mxu0 0.0
    %764 = vmatprep.subr.mxu0 0.0
    %765 = vmatpush1.msra.mxu0 0.0
    %766 = vmatprep.subr.mxu0 0.0
    %767 = vmatpush1.msra.mxu0 0.0
    %768 = vmatprep.subr.mxu0 0.0
    %769 = vmatpush1.msra.mxu0 0.0
    %770 = vmatprep.subr.mxu0 0.0
    %771 = vmatpush1.msra.mxu0 0.0
    %772 = vmatprep.subr.mxu0 0.0
    %773 = vmatpush1.msra.mxu0 0.0
    %774 = vmatprep.subr.mxu0 0.0
    %775 = vmatpush1.msra.mxu0 0.0
    %776 = vmatprep.subr.mxu0 0.0
    %777 = vmatpush1.msra.mxu0 0.0
    %778 = vmatprep.subr.mxu0 0.0
    %779 = vmatpush1.msra.mxu0 0.0
    %780 = vmatprep.subr.mxu0 0.0
    %781 = vmatpush1.msra.mxu0 0.0
    %782 = vmatprep.subr.mxu0 0.0
    %783 = vmatpush1.msra.mxu0 0.0
    %784 = vmatprep.subr.mxu0 0.0
    %785 = vmatpush1.msra.mxu0 0.0
    %786 = vmatprep.subr.mxu0 0.0
    %787 = vmatpush1.msra.mxu0 0.0
    %788 = vmatprep.subr.mxu0 0.0
    %789 = vmatpush1.msra.mxu0 0.0
    %790 = vmatprep.subr.mxu0 0.0
    %791 = vmatpush1.msra.mxu0 0.0
    %792 = vmatprep.subr.mxu0 0.0
    %793 = vmatpush1.msra.mxu0 0.0
    %794 = vmatprep.subr.mxu0 0.0
    %795 = vmatpush1.msra.mxu0 0.0
    %796 = vmatprep.mubr.f32.mxu0 0.0
    %797 = vmatmul.mubr.f32.gmra.mrb[0].mxu0 %v730
    %v798 = vpop.f32.mrb[0].mxu0
    %v799 = vadd.f32 0.0, %v798
    %v800 = vpop.f32.mrb[0].mxu0
    %801 = vdwg.mxu0
    %803 = vset.pattern.permute.xlu0 0
    %804 = vperm.xlu0 %803, %v387
    %v805 = vpop.permute.xlu0 %804
    %v807 = vmul.f32 %v805, %v799
    %s808 = scalar_lea.vmem [#allocation6], 256
    %v809 = vld [vmem:[%s808] sm:$0xff]
    %v810 = vld [vmem:[%s808 + $0x8] sm:$0xff]
    %v811 = vld [vmem:[%s808 + $0x10] sm:$0xff]
    %v812 = vld [vmem:[%s808 + $0x18] sm:$0xff]
    %v813 = vld [vmem:[%s808 + $0x20] sm:$0xff]
    %v814 = vld [vmem:[%s808 + $0x28] sm:$0xff]
    %v815 = vld [vmem:[%s808 + $0x30] sm:$0xff]
    %v816 = vld [vmem:[%s808 + $0x38] sm:$0xff]
    %v817 = vld [vmem:[%s808 + $0x40] sm:$0xff]
    %v818 = vld [vmem:[%s808 + $0x48] sm:$0xff]
    %v819 = vld [vmem:[%s808 + $0x50] sm:$0xff]
    %v820 = vld [vmem:[%s808 + $0x58] sm:$0xff]
    %v821 = vld [vmem:[%s808 + $0x60] sm:$0xff]
    %v822 = vld [vmem:[%s808 + $0x68] sm:$0xff]
    %v823 = vld [vmem:[%s808 + $0x70] sm:$0xff]
    %v824 = vld [vmem:[%s808 + $0x78] sm:$0xff]
    %825 = vset.pattern.permute.xlu0 1
    %826 = vperm.xlu0 %825, %v387
    %v827 = vpop.permute.xlu0 %826
    %v829 = vmul.f32 %v827, %v799
    %s830 = scalar_lea.vmem [#allocation6], 384
    %v831 = vld [vmem:[%s830] sm:$0xff]
    %v832 = vld [vmem:[%s830 + $0x8] sm:$0xff]
    %v833 = vld [vmem:[%s830 + $0x10] sm:$0xff]
    %v834 = vld [vmem:[%s830 + $0x18] sm:$0xff]
    %v835 = vld [vmem:[%s830 + $0x20] sm:$0xff]
    %v836 = vld [vmem:[%s830 + $0x28] sm:$0xff]
    %v837 = vld [vmem:[%s830 + $0x30] sm:$0xff]
    %v838 = vld [vmem:[%s830 + $0x38] sm:$0xff]
    %v839 = vld [vmem:[%s830 + $0x40] sm:$0xff]
    %v840 = vld [vmem:[%s830 + $0x48] sm:$0xff]
    %v841 = vld [vmem:[%s830 + $0x50] sm:$0xff]
    %v842 = vld [vmem:[%s830 + $0x58] sm:$0xff]
    %v843 = vld [vmem:[%s830 + $0x60] sm:$0xff]
    %v844 = vld [vmem:[%s830 + $0x68] sm:$0xff]
    %v845 = vld [vmem:[%s830 + $0x70] sm:$0xff]
    %v846 = vld [vmem:[%s830 + $0x78] sm:$0xff]
    %847 = vmatprep.subr.mxu0 0.0
    %848 = vmatpush1.msra.mxu0 %v831
    %849 = vmatprep.subr.mxu0 0.0
    %850 = vmatpush1.msra.mxu0 %v832
    %851 = vmatprep.subr.mxu0 0.0
    %852 = vmatpush1.msra.mxu0 %v833
    %853 = vmatprep.subr.mxu0 0.0
    %854 = vmatpush1.msra.mxu0 %v834
    %855 = vmatprep.subr.mxu0 0.0
    %856 = vmatpush1.msra.mxu0 %v835
    %857 = vmatprep.subr.mxu0 0.0
    %858 = vmatpush1.msra.mxu0 %v836
    %859 = vmatprep.subr.mxu0 0.0
    %860 = vmatpush1.msra.mxu0 %v837
    %861 = vmatprep.subr.mxu0 0.0
    %862 = vmatpush1.msra.mxu0 %v838
    %863 = vmatprep.subr.mxu0 0.0
    %864 = vmatpush1.msra.mxu0 %v839
    %865 = vmatprep.subr.mxu0 0.0
    %866 = vmatpush1.msra.mxu0 %v840
    %867 = vmatprep.subr.mxu0 0.0
    %868 = vmatpush1.msra.mxu0 %v841
    %869 = vmatprep.subr.mxu0 0.0
    %870 = vmatpush1.msra.mxu0 %v842
    %871 = vmatprep.subr.mxu0 0.0
    %872 = vmatpush1.msra.mxu0 %v843
    %873 = vmatprep.subr.mxu0 0.0
    %874 = vmatpush1.msra.mxu0 %v844
    %875 = vmatprep.subr.mxu0 0.0
    %876 = vmatpush1.msra.mxu0 %v845
    %877 = vmatprep.subr.mxu0 0.0
    %878 = vmatpush1.msra.mxu0 %v846
    %879 = vmatprep.subr.mxu0 0.0
    %880 = vmatpush1.msra.mxu0 0.0
    %881 = vmatprep.subr.mxu0 0.0
    %882 = vmatpush1.msra.mxu0 0.0
    %883 = vmatprep.subr.mxu0 0.0
    %884 = vmatpush1.msra.mxu0 0.0
    %885 = vmatprep.subr.mxu0 0.0
    %886 = vmatpush1.msra.mxu0 0.0
    %887 = vmatprep.subr.mxu0 0.0
    %888 = vmatpush1.msra.mxu0 0.0
    %889 = vmatprep.subr.mxu0 0.0
    %890 = vmatpush1.msra.mxu0 0.0
    %891 = vmatprep.subr.mxu0 0.0
    %892 = vmatpush1.msra.mxu0 0.0
    %893 = vmatprep.subr.mxu0 0.0
    %894 = vmatpush1.msra.mxu0 0.0
    %895 = vmatprep.subr.mxu0 0.0
    %896 = vmatpush1.msra.mxu0 0.0
    %897 = vmatprep.subr.mxu0 0.0
    %898 = vmatpush1.msra.mxu0 0.0
    %899 = vmatprep.subr.mxu0 0.0
    %900 = vmatpush1.msra.mxu0 0.0
    %901 = vmatprep.subr.mxu0 0.0
    %902 = vmatpush1.msra.mxu0 0.0
    %903 = vmatprep.subr.mxu0 0.0
    %904 = vmatpush1.msra.mxu0 0.0
    %905 = vmatprep.subr.mxu0 0.0
    %906 = vmatpush1.msra.mxu0 0.0
    %907 = vmatprep.subr.mxu0 0.0
    %908 = vmatpush1.msra.mxu0 0.0
    %909 = vmatprep.subr.mxu0 0.0
    %910 = vmatpush1.msra.mxu0 0.0
    %911 = vmatprep.mubr.f32.mxu0 0.0
    %912 = vmatmul.mubr.f32.gmra.mrb[0].mxu0 %v829
    %v913 = vpop.f32.mrb[0].mxu0
    %v914 = vadd.f32 0.0, %v913
    %v915 = vpop.f32.mrb[0].mxu0
    %916 = vdwg.mxu0
    %917 = vmatprep.subr.mxu0 0.0
    %918 = vmatpush1.msra.mxu0 %v809
    %919 = vmatprep.subr.mxu0 0.0
    %920 = vmatpush1.msra.mxu0 %v810
    %921 = vmatprep.subr.mxu0 0.0
    %922 = vmatpush1.msra.mxu0 %v811
    %923 = vmatprep.subr.mxu0 0.0
    %924 = vmatpush1.msra.mxu0 %v812
    %925 = vmatprep.subr.mxu0 0.0
    %926 = vmatpush1.msra.mxu0 %v813
    %927 = vmatprep.subr.mxu0 0.0
    %928 = vmatpush1.msra.mxu0 %v814
    %929 = vmatprep.subr.mxu0 0.0
    %930 = vmatpush1.msra.mxu0 %v815
    %931 = vmatprep.subr.mxu0 0.0
    %932 = vmatpush1.msra.mxu0 %v816
    %933 = vmatprep.subr.mxu0 0.0
    %934 = vmatpush1.msra.mxu0 %v817
    %935 = vmatprep.subr.mxu0 0.0
    %936 = vmatpush1.msra.mxu0 %v818
    %937 = vmatprep.subr.mxu0 0.0
    %938 = vmatpush1.msra.mxu0 %v819
    %939 = vmatprep.subr.mxu0 0.0
    %940 = vmatpush1.msra.mxu0 %v820
    %941 = vmatprep.subr.mxu0 0.0
    %942 = vmatpush1.msra.mxu0 %v821
    %943 = vmatprep.subr.mxu0 0.0
    %944 = vmatpush1.msra.mxu0 %v822
    %945 = vmatprep.subr.mxu0 0.0
    %946 = vmatpush1.msra.mxu0 %v823
    %947 = vmatprep.subr.mxu0 0.0
    %948 = vmatpush1.msra.mxu0 %v824
    %949 = vmatprep.subr.mxu0 0.0
    %950 = vmatpush1.msra.mxu0 0.0
    %951 = vmatprep.subr.mxu0 0.0
    %952 = vmatpush1.msra.mxu0 0.0
    %953 = vmatprep.subr.mxu0 0.0
    %954 = vmatpush1.msra.mxu0 0.0
    %955 = vmatprep.subr.mxu0 0.0
    %956 = vmatpush1.msra.mxu0 0.0
    %957 = vmatprep.subr.mxu0 0.0
    %958 = vmatpush1.msra.mxu0 0.0
    %959 = vmatprep.subr.mxu0 0.0
    %960 = vmatpush1.msra.mxu0 0.0
    %961 = vmatprep.subr.mxu0 0.0
    %962 = vmatpush1.msra.mxu0 0.0
    %963 = vmatprep.subr.mxu0 0.0
    %964 = vmatpush1.msra.mxu0 0.0
    %965 = vmatprep.subr.mxu0 0.0
    %966 = vmatpush1.msra.mxu0 0.0
    %967 = vmatprep.subr.mxu0 0.0
    %968 = vmatpush1.msra.mxu0 0.0
    %969 = vmatprep.subr.mxu0 0.0
    %970 = vmatpush1.msra.mxu0 0.0
    %971 = vmatprep.subr.mxu0 0.0
    %972 = vmatpush1.msra.mxu0 0.0
    %973 = vmatprep.subr.mxu0 0.0
    %974 = vmatpush1.msra.mxu0 0.0
    %975 = vmatprep.subr.mxu0 0.0
    %976 = vmatpush1.msra.mxu0 0.0
    %977 = vmatprep.subr.mxu0 0.0
    %978 = vmatpush1.msra.mxu0 0.0
    %979 = vmatprep.subr.mxu0 0.0
    %980 = vmatpush1.msra.mxu0 0.0
    %981 = vmatprep.mubr.f32.mxu0 0.0
    %982 = vmatmul.mubr.f32.gmra.mrb[0].mxu0 %v807
    %v983 = vpop.f32.mrb[0].mxu0
    %v984 = vadd.f32 %v914, %v983
    %v985 = vpop.f32.mrb[0].mxu0
    %986 = vdwg.mxu0
    %987 = vset.pattern.permute.xlu0 2
    %988 = vperm.xlu0 %987, %v387
    %v989 = vpop.permute.xlu0 %988
    %v991 = vmul.f32 %v989, %v799
    %s992 = scalar_lea.vmem [#allocation6], 512
    %v993 = vld [vmem:[%s992] sm:$0xff]
    %v994 = vld [vmem:[%s992 + $0x8] sm:$0xff]
    %v995 = vld [vmem:[%s992 + $0x10] sm:$0xff]
    %v996 = vld [vmem:[%s992 + $0x18] sm:$0xff]
    %v997 = vld [vmem:[%s992 + $0x20] sm:$0xff]
    %v998 = vld [vmem:[%s992 + $0x28] sm:$0xff]
    %v999 = vld [vmem:[%s992 + $0x30] sm:$0xff]
    %v1000 = vld [vmem:[%s992 + $0x38] sm:$0xff]
    %v1001 = vld [vmem:[%s992 + $0x40] sm:$0xff]
    %v1002 = vld [vmem:[%s992 + $0x48] sm:$0xff]
    %v1003 = vld [vmem:[%s992 + $0x50] sm:$0xff]
    %v1004 = vld [vmem:[%s992 + $0x58] sm:$0xff]
    %v1005 = vld [vmem:[%s992 + $0x60] sm:$0xff]
    %v1006 = vld [vmem:[%s992 + $0x68] sm:$0xff]
    %v1007 = vld [vmem:[%s992 + $0x70] sm:$0xff]
    %v1008 = vld [vmem:[%s992 + $0x78] sm:$0xff]
    %1009 = vmatprep.subr.mxu0 0.0
    %1010 = vmatpush1.msra.mxu0 %v993
    %1011 = vmatprep.subr.mxu0 0.0
    %1012 = vmatpush1.msra.mxu0 %v994
    %1013 = vmatprep.subr.mxu0 0.0
    %1014 = vmatpush1.msra.mxu0 %v995
    %1015 = vmatprep.subr.mxu0 0.0
    %1016 = vmatpush1.msra.mxu0 %v996
    %1017 = vmatprep.subr.mxu0 0.0
    %1018 = vmatpush1.msra.mxu0 %v997
    %1019 = vmatprep.subr.mxu0 0.0
    %1020 = vmatpush1.msra.mxu0 %v998
    %1021 = vmatprep.subr.mxu0 0.0
    %1022 = vmatpush1.msra.mxu0 %v999
    %1023 = vmatprep.subr.mxu0 0.0
    %1024 = vmatpush1.msra.mxu0 %v1000
    %1025 = vmatprep.subr.mxu0 0.0
    %1026 = vmatpush1.msra.mxu0 %v1001
    %1027 = vmatprep.subr.mxu0 0.0
    %1028 = vmatpush1.msra.mxu0 %v1002
    %1029 = vmatprep.subr.mxu0 0.0
    %1030 = vmatpush1.msra.mxu0 %v1003
    %1031 = vmatprep.subr.mxu0 0.0
    %1032 = vmatpush1.msra.mxu0 %v1004
    %1033 = vmatprep.subr.mxu0 0.0
    %1034 = vmatpush1.msra.mxu0 %v1005
    %1035 = vmatprep.subr.mxu0 0.0
    %1036 = vmatpush1.msra.mxu0 %v1006
    %1037 = vmatprep.subr.mxu0 0.0
    %1038 = vmatpush1.msra.mxu0 %v1007
    %1039 = vmatprep.subr.mxu0 0.0
    %1040 = vmatpush1.msra.mxu0 %v1008
    %1041 = vmatprep.subr.mxu0 0.0
    %1042 = vmatpush1.msra.mxu0 0.0
    %1043 = vmatprep.subr.mxu0 0.0
    %1044 = vmatpush1.msra.mxu0 0.0
    %1045 = vmatprep.subr.mxu0 0.0
    %1046 = vmatpush1.msra.mxu0 0.0
    %1047 = vmatprep.subr.mxu0 0.0
    %1048 = vmatpush1.msra.mxu0 0.0
    %1049 = vmatprep.subr.mxu0 0.0
    %1050 = vmatpush1.msra.mxu0 0.0
    %1051 = vmatprep.subr.mxu0 0.0
    %1052 = vmatpush1.msra.mxu0 0.0
    %1053 = vmatprep.subr.mxu0 0.0
    %1054 = vmatpush1.msra.mxu0 0.0
    %1055 = vmatprep.subr.mxu0 0.0
    %1056 = vmatpush1.msra.mxu0 0.0
    %1057 = vmatprep.subr.mxu0 0.0
    %1058 = vmatpush1.msra.mxu0 0.0
    %1059 = vmatprep.subr.mxu0 0.0
    %1060 = vmatpush1.msra.mxu0 0.0
    %1061 = vmatprep.subr.mxu0 0.0
    %1062 = vmatpush1.msra.mxu0 0.0
    %1063 = vmatprep.subr.mxu0 0.0
    %1064 = vmatpush1.msra.mxu0 0.0
    %1065 = vmatprep.subr.mxu0 0.0
    %1066 = vmatpush1.msra.mxu0 0.0
    %1067 = vmatprep.subr.mxu0 0.0
    %1068 = vmatpush1.msra.mxu0 0.0
    %1069 = vmatprep.subr.mxu0 0.0
    %1070 = vmatpush1.msra.mxu0 0.0
    %1071 = vmatprep.subr.mxu0 0.0
    %1072 = vmatpush1.msra.mxu0 0.0
    %1073 = vmatprep.mubr.f32.mxu0 0.0
    %1074 = vmatmul.mubr.f32.gmra.mrb[0].mxu0 %v991
    %v1075 = vpop.f32.mrb[0].mxu0
    %v1076 = vadd.f32 0.0, %v1075
    %v1077 = vpop.f32.mrb[0].mxu0
    %1078 = vdwg.mxu0
    %v1079 = vadd.f32 %v984, %v1076
    %v1081 = vsel %vm233, %v128, 0
    %v1084 = vsel %vm233, %v129, 0
    %1086 = vmatprep.subr.mxu0 0.0
    %1087 = vmatpush1.msra.mxu0 %v1079
    %1088 = vmatprep.subr.mxu0 0.0
    %1089 = vmatpush1.msra.mxu0 0.0
    %1090 = vmatprep.subr.mxu0 0.0
    %1091 = vmatpush1.msra.mxu0 0.0
    %1092 = vmatprep.subr.mxu0 0.0
    %1093 = vmatpush1.msra.mxu0 0.0
    %1094 = vmatprep.subr.mxu0 0.0
    %1095 = vmatpush1.msra.mxu0 0.0
    %1096 = vmatprep.subr.mxu0 0.0
    %1097 = vmatpush1.msra.mxu0 0.0
    %1098 = vmatprep.subr.mxu0 0.0
    %1099 = vmatpush1.msra.mxu0 0.0
    %1100 = vmatprep.subr.mxu0 0.0
    %1101 = vmatpush1.msra.mxu0 0.0
    %1102 = vmatprep.subr.mxu0 0.0
    %1103 = vmatpush1.msra.mxu0 0.0
    %1104 = vmatprep.subr.mxu0 0.0
    %1105 = vmatpush1.msra.mxu0 0.0
    %1106 = vmatprep.subr.mxu0 0.0
    %1107 = vmatpush1.msra.mxu0 0.0
    %1108 = vmatprep.subr.mxu0 0.0
    %1109 = vmatpush1.msra.mxu0 0.0
    %1110 = vmatprep.subr.mxu0 0.0
    %1111 = vmatpush1.msra.mxu0 0.0
    %1112 = vmatprep.subr.mxu0 0.0
    %1113 = vmatpush1.msra.mxu0 0.0
    %1114 = vmatprep.subr.mxu0 0.0
    %1115 = vmatpush1.msra.mxu0 0.0
    %1116 = vmatprep.subr.mxu0 0.0
    %1117 = vmatpush1.msra.mxu0 0.0
    %1118 = vmatprep.subr.mxu0 0.0
    %1119 = vmatpush1.msra.mxu0 0.0
    %1120 = vmatprep.subr.mxu0 0.0
    %1121 = vmatpush1.msra.mxu0 0.0
    %1122 = vmatprep.subr.mxu0 0.0
    %1123 = vmatpush1.msra.mxu0 0.0
    %1124 = vmatprep.subr.mxu0 0.0
    %1125 = vmatpush1.msra.mxu0 0.0
    %1126 = vmatprep.subr.mxu0 0.0
    %1127 = vmatpush1.msra.mxu0 0.0
    %1128 = vmatprep.subr.mxu0 0.0
    %1129 = vmatpush1.msra.mxu0 0.0
    %1130 = vmatprep.subr.mxu0 0.0
    %1131 = vmatpush1.msra.mxu0 0.0
    %1132 = vmatprep.subr.mxu0 0.0
    %1133 = vmatpush1.msra.mxu0 0.0
    %1134 = vmatprep.subr.mxu0 0.0
    %1135 = vmatpush1.msra.mxu0 0.0
    %1136 = vmatprep.subr.mxu0 0.0
    %1137 = vmatpush1.msra.mxu0 0.0
    %1138 = vmatprep.subr.mxu0 0.0
    %1139 = vmatpush1.msra.mxu0 0.0
    %1140 = vmatprep.subr.mxu0 0.0
    %1141 = vmatpush1.msra.mxu0 0.0
    %1142 = vmatprep.subr.mxu0 0.0
    %1143 = vmatpush1.msra.mxu0 0.0
    %1144 = vmatprep.subr.mxu0 0.0
    %1145 = vmatpush1.msra.mxu0 0.0
    %1146 = vmatprep.subr.mxu0 0.0
    %1147 = vmatpush1.msra.mxu0 0.0
    %1148 = vmatprep.subr.mxu0 0.0
    %1149 = vmatpush1.msra.mxu0 0.0
    %1150 = vmatprep.mubr.f32.mxu0 0.0
    %1151 = vmatmul.mubr.f32.gmra.mrb[0].mxu0 %v1081
    %v1152 = vpop.f32.mrb[0].mxu0
    %v1153 = vadd.f32 0.0, %v1152
    %v1154 = vpop.f32.mrb[0].mxu0
    %1155 = vmatprep.mubr.f32.mxu0 0.0
    %1156 = vmatmul.mubr.f32.gmra.mrb[0].mxu0 %v1084
    %v1157 = vpop.f32.mrb[0].mxu0
    %v1158 = vadd.f32 0.0, %v1157
    %v1159 = vpop.f32.mrb[0].mxu0
    %1160 = vdwg.mxu0
    %v1161 = vadd.f32 %v721, %v1153
    %v1162 = vadd.f32 %v726, %v1158
    %v1163 = vld [vmem:[#allocation7] sm:$0x1]
    %v1165 = vlaneseq
    %v1166 = vshrl.u32 %v1165, 7
    %v1167 = vsub.s32 0, %v1166
    %v1168 = vrot.slane %v1163, %v1167
    %v1170 = vadd.f32 %v1161, %v1168
    %v1171 = vadd.f32 %v1162, %v1168
    %v1172 = vmax.f32 %v1170, 0.0
    %v1173 = vmax.f32 %v1171, 0.0
    %s1174 = scalar_lea.vmem %s7, 8
    %v1175 = vld [vmem:[%s1174] sm:$0xff]
    %s1176 = scalar_lea.vmem %s8, 1
    %v1177 = vld [vmem:[%s1176] sm:$0x1]
    %v1179 = vlaneseq
    %v1180 = vshrl.u32 %v1179, 7
    %v1181 = vsub.s32 0, %v1180
    %v1182 = vrot.slane %v1177, %v1181
    %1184 = vmatprep.subr.mxu0 0.0
    %1185 = vmatpush1.msra.mxu0 %v1175
    %1186 = vmatprep.subr.mxu0 0.0
    %1187 = vmatpush1.msra.mxu0 0.0
    %1188 = vmatprep.subr.mxu0 0.0
    %1189 = vmatpush1.msra.mxu0 0.0
    %1190 = vmatprep.subr.mxu0 0.0
    %1191 = vmatpush1.msra.mxu0 0.0
    %1192 = vmatprep.subr.mxu0 0.0
    %1193 = vmatpush1.msra.mxu0 0.0
    %1194 = vmatprep.subr.mxu0 0.0
    %1195 = vmatpush1.msra.mxu0 0.0
    %1196 = vmatprep.subr.mxu0 0.0
    %1197 = vmatpush1.msra.mxu0 0.0
    %1198 = vmatprep.subr.mxu0 0.0
    %1199 = vmatpush1.msra.mxu0 0.0
    %1200 = vmatprep.subr.mxu0 0.0
    %1201 = vmatpush1.msra.mxu0 0.0
    %1202 = vmatprep.subr.mxu0 0.0
    %1203 = vmatpush1.msra.mxu0 0.0
    %1204 = vmatprep.subr.mxu0 0.0
    %1205 = vmatpush1.msra.mxu0 0.0
    %1206 = vmatprep.subr.mxu0 0.0
    %1207 = vmatpush1.msra.mxu0 0.0
    %1208 = vmatprep.subr.mxu0 0.0
    %1209 = vmatpush1.msra.mxu0 0.0
    %1210 = vmatprep.subr.mxu0 0.0
    %1211 = vmatpush1.msra.mxu0 0.0
    %1212 = vmatprep.subr.mxu0 0.0
    %1213 = vmatpush1.msra.mxu0 0.0
    %1214 = vmatprep.subr.mxu0 0.0
    %1215 = vmatpush1.msra.mxu0 0.0
    %1216 = vmatprep.subr.mxu0 0.0
    %1217 = vmatpush1.msra.mxu0 0.0
    %1218 = vmatprep.subr.mxu0 0.0
    %1219 = vmatpush1.msra.mxu0 0.0
    %1220 = vmatprep.subr.mxu0 0.0
    %1221 = vmatpush1.msra.mxu0 0.0
    %1222 = vmatprep.subr.mxu0 0.0
    %1223 = vmatpush1.msra.mxu0 0.0
    %1224 = vmatprep.subr.mxu0 0.0
    %1225 = vmatpush1.msra.mxu0 0.0
    %1226 = vmatprep.subr.mxu0 0.0
    %1227 = vmatpush1.msra.mxu0 0.0
    %1228 = vmatprep.subr.mxu0 0.0
    %1229 = vmatpush1.msra.mxu0 0.0
    %1230 = vmatprep.subr.mxu0 0.0
    %1231 = vmatpush1.msra.mxu0 0.0
    %1232 = vmatprep.subr.mxu0 0.0
    %1233 = vmatpush1.msra.mxu0 0.0
    %1234 = vmatprep.subr.mxu0 0.0
    %1235 = vmatpush1.msra.mxu0 0.0
    %1236 = vmatprep.subr.mxu0 0.0
    %1237 = vmatpush1.msra.mxu0 0.0
    %1238 = vmatprep.subr.mxu0 0.0
    %1239 = vmatpush1.msra.mxu0 0.0
    %1240 = vmatprep.subr.mxu0 0.0
    %1241 = vmatpush1.msra.mxu0 0.0
    %1242 = vmatprep.subr.mxu0 0.0
    %1243 = vmatpush1.msra.mxu0 0.0
    %1244 = vmatprep.subr.mxu0 0.0
    %1245 = vmatpush1.msra.mxu0 0.0
    %1246 = vmatprep.subr.mxu0 0.0
    %1247 = vmatpush1.msra.mxu0 0.0
    %1248 = vmatprep.mubr.f32.mxu0 0.0
    %1249 = vmatmul.mubr.f32.gmra.mrb[0].mxu0 %v235
    %v1250 = vpop.f32.mrb[0].mxu0
    %v1251 = vadd.f32 %v1182, %v1250
    %v1252 = vpop.f32.mrb[0].mxu0
    %1253 = vdwg.mxu0
    %v1254 = vmax.f32 %v1251, 0.0
    %s1255 = scalar_lea.vmem %s9, 16
    %v1256 = vld [vmem:[%s1255] sm:$0xff]
    %v1257 = vld [vmem:[%s1255 + $0x8] sm:$0xff]
    %s1258 = scalar_lea.vmem %s10, 1
    %v1259 = vld [vmem:[%s1258] sm:$0x1]
    %v1261 = vlaneseq
    %v1262 = vshrl.u32 %v1261, 7
    %v1263 = vsub.s32 0, %v1262
    %v1264 = vrot.slane %v1259, %v1263
    %v1267 = vsel %vm143, %v1254, 0
    %1269 = vmatprep.subr.mxu0 0.0
    %1270 = vmatpush1.msra.mxu0 %v1256
    %1271 = vmatprep.subr.mxu0 0.0
    %1272 = vmatpush1.msra.mxu0 %v1257
    %1273 = vmatprep.subr.mxu0 0.0
    %1274 = vmatpush1.msra.mxu0 0.0
    %1275 = vmatprep.subr.mxu0 0.0
    %1276 = vmatpush1.msra.mxu0 0.0
    %1277 = vmatprep.subr.mxu0 0.0
    %1278 = vmatpush1.msra.mxu0 0.0
    %1279 = vmatprep.subr.mxu0 0.0
    %1280 = vmatpush1.msra.mxu0 0.0
    %1281 = vmatprep.subr.mxu0 0.0
    %1282 = vmatpush1.msra.mxu0 0.0
    %1283 = vmatprep.subr.mxu0 0.0
    %1284 = vmatpush1.msra.mxu0 0.0
    %1285 = vmatprep.subr.mxu0 0.0
    %1286 = vmatpush1.msra.mxu0 0.0
    %1287 = vmatprep.subr.mxu0 0.0
    %1288 = vmatpush1.msra.mxu0 0.0
    %1289 = vmatprep.subr.mxu0 0.0
    %1290 = vmatpush1.msra.mxu0 0.0
    %1291 = vmatprep.subr.mxu0 0.0
    %1292 = vmatpush1.msra.mxu0 0.0
    %1293 = vmatprep.subr.mxu0 0.0
    %1294 = vmatpush1.msra.mxu0 0.0
    %1295 = vmatprep.subr.mxu0 0.0
    %1296 = vmatpush1.msra.mxu0 0.0
    %1297 = vmatprep.subr.mxu0 0.0
    %1298 = vmatpush1.msra.mxu0 0.0
    %1299 = vmatprep.subr.mxu0 0.0
    %1300 = vmatpush1.msra.mxu0 0.0
    %1301 = vmatprep.subr.mxu0 0.0
    %1302 = vmatpush1.msra.mxu0 0.0
    %1303 = vmatprep.subr.mxu0 0.0
    %1304 = vmatpush1.msra.mxu0 0.0
    %1305 = vmatprep.subr.mxu0 0.0
    %1306 = vmatpush1.msra.mxu0 0.0
    %1307 = vmatprep.subr.mxu0 0.0
    %1308 = vmatpush1.msra.mxu0 0.0
    %1309 = vmatprep.subr.mxu0 0.0
    %1310 = vmatpush1.msra.mxu0 0.0
    %1311 = vmatprep.subr.mxu0 0.0
    %1312 = vmatpush1.msra.mxu0 0.0
    %1313 = vmatprep.subr.mxu0 0.0
    %1314 = vmatpush1.msra.mxu0 0.0
    %1315 = vmatprep.subr.mxu0 0.0
    %1316 = vmatpush1.msra.mxu0 0.0
    %1317 = vmatprep.subr.mxu0 0.0
    %1318 = vmatpush1.msra.mxu0 0.0
    %1319 = vmatprep.subr.mxu0 0.0
    %1320 = vmatpush1.msra.mxu0 0.0
    %1321 = vmatprep.subr.mxu0 0.0
    %1322 = vmatpush1.msra.mxu0 0.0
    %1323 = vmatprep.subr.mxu0 0.0
    %1324 = vmatpush1.msra.mxu0 0.0
    %1325 = vmatprep.subr.mxu0 0.0
    %1326 = vmatpush1.msra.mxu0 0.0
    %1327 = vmatprep.subr.mxu0 0.0
    %1328 = vmatpush1.msra.mxu0 0.0
    %1329 = vmatprep.subr.mxu0 0.0
    %1330 = vmatpush1.msra.mxu0 0.0
    %1331 = vmatprep.subr.mxu0 0.0
    %1332 = vmatpush1.msra.mxu0 0.0
    %1333 = vmatprep.mubr.f32.mxu0 0.0
    %1334 = vmatmul.mubr.f32.gmra.mrb[0].mxu0 %v1267
    %v1335 = vpop.f32.mrb[0].mxu0
    %v1336 = vadd.f32 %v1264, %v1335
    %v1337 = vpop.f32.mrb[0].mxu0
    %1338 = vdwg.mxu0
    %1339 = vmatprep.subr.mxu0 0.0
    %1340 = vmatpush1.msra.mxu0 %v1172
    %1341 = vmatprep.subr.mxu0 0.0
    %1342 = vmatpush1.msra.mxu0 %v1173
    %1343 = vmatprep.subr.mxu0 0.0
    %1344 = vmatpush1.msra.mxu0 0.0
    %1345 = vmatprep.subr.mxu0 0.0
    %1346 = vmatpush1.msra.mxu0 0.0
    %1347 = vmatprep.subr.mxu0 0.0
    %1348 = vmatpush1.msra.mxu0 0.0
    %1349 = vmatprep.subr.mxu0 0.0
    %1350 = vmatpush1.msra.mxu0 0.0
    %1351 = vmatprep.subr.mxu0 0.0
    %1352 = vmatpush1.msra.mxu0 0.0
    %1353 = vmatprep.subr.mxu0 0.0
    %1354 = vmatpush1.msra.mxu0 0.0
    %1355 = vmatprep.subr.mxu0 0.0
    %1356 = vmatpush1.msra.mxu0 0.0
    %1357 = vmatprep.subr.mxu0 0.0
    %1358 = vmatpush1.msra.mxu0 0.0
    %1359 = vmatprep.subr.mxu0 0.0
    %1360 = vmatpush1.msra.mxu0 0.0
    %1361 = vmatprep.subr.mxu0 0.0
    %1362 = vmatpush1.msra.mxu0 0.0
    %1363 = vmatprep.subr.mxu0 0.0
    %1364 = vmatpush1.msra.mxu0 0.0
    %1365 = vmatprep.subr.mxu0 0.0
    %1366 = vmatpush1.msra.mxu0 0.0
    %1367 = vmatprep.subr.mxu0 0.0
    %1368 = vmatpush1.msra.mxu0 0.0
    %1369 = vmatprep.subr.mxu0 0.0
    %1370 = vmatpush1.msra.mxu0 0.0
    %1371 = vmatprep.subr.mxu0 0.0
    %1372 = vmatpush1.msra.mxu0 0.0
    %1373 = vmatprep.subr.mxu0 0.0
    %1374 = vmatpush1.msra.mxu0 0.0
    %1375 = vmatprep.subr.mxu0 0.0
    %1376 = vmatpush1.msra.mxu0 0.0
    %1377 = vmatprep.subr.mxu0 0.0
    %1378 = vmatpush1.msra.mxu0 0.0
    %1379 = vmatprep.subr.mxu0 0.0
    %1380 = vmatpush1.msra.mxu0 0.0
    %1381 = vmatprep.subr.mxu0 0.0
    %1382 = vmatpush1.msra.mxu0 0.0
    %1383 = vmatprep.subr.mxu0 0.0
    %1384 = vmatpush1.msra.mxu0 0.0
    %1385 = vmatprep.subr.mxu0 0.0
    %1386 = vmatpush1.msra.mxu0 0.0
    %1387 = vmatprep.subr.mxu0 0.0
    %1388 = vmatpush1.msra.mxu0 0.0
    %1389 = vmatprep.subr.mxu0 0.0
    %1390 = vmatpush1.msra.mxu0 0.0
    %1391 = vmatprep.subr.mxu0 0.0
    %1392 = vmatpush1.msra.mxu0 0.0
    %1393 = vmatprep.subr.mxu0 0.0
    %1394 = vmatpush1.msra.mxu0 0.0
    %1395 = vmatprep.subr.mxu0 0.0
    %1396 = vmatpush1.msra.mxu0 0.0
    %1397 = vmatprep.subr.mxu0 0.0
    %1398 = vmatpush1.msra.mxu0 0.0
    %1399 = vmatprep.subr.mxu0 0.0
    %1400 = vmatpush1.msra.mxu0 0.0
    %1401 = vmatprep.subr.mxu0 0.0
    %1402 = vmatpush1.msra.mxu0 0.0
    %1403 = vmatprep.mubr.f32.mxu0 0.0
    %1404 = vmatmul.mubr.f32.gmra.mrb[0].mxu0 %v391
    %v1405 = vpop.f32.mrb[0].mxu0
    %v1406 = vadd.f32 0.0, %v1405
    %v1407 = vpop.f32.mrb[0].mxu0
    %1408 = vmatprep.mubr.f32.mxu0 0.0
    %1409 = vmatmul.mubr.f32.gmra.mrb[0].mxu0 %v394
    %v1410 = vpop.f32.mrb[0].mxu0
    %v1411 = vadd.f32 0.0, %v1410
    %v1412 = vpop.f32.mrb[0].mxu0
    %1413 = vdwg.mxu0
    %s1414 = scalar_lea.vmem [#allocation6], 640
    %v1415 = vld [vmem:[%s1414] sm:$0xff]
    %v1416 = vld [vmem:[%s1414 + $0x8] sm:$0xff]
    %v1417 = vld [vmem:[%s1414 + $0x10] sm:$0xff]
    %v1418 = vld [vmem:[%s1414 + $0x18] sm:$0xff]
    %v1419 = vld [vmem:[%s1414 + $0x20] sm:$0xff]
    %v1420 = vld [vmem:[%s1414 + $0x28] sm:$0xff]
    %v1421 = vld [vmem:[%s1414 + $0x30] sm:$0xff]
    %v1422 = vld [vmem:[%s1414 + $0x38] sm:$0xff]
    %v1423 = vld [vmem:[%s1414 + $0x40] sm:$0xff]
    %v1424 = vld [vmem:[%s1414 + $0x48] sm:$0xff]
    %v1425 = vld [vmem:[%s1414 + $0x50] sm:$0xff]
    %v1426 = vld [vmem:[%s1414 + $0x58] sm:$0xff]
    %v1427 = vld [vmem:[%s1414 + $0x60] sm:$0xff]
    %v1428 = vld [vmem:[%s1414 + $0x68] sm:$0xff]
    %v1429 = vld [vmem:[%s1414 + $0x70] sm:$0xff]
    %v1430 = vld [vmem:[%s1414 + $0x78] sm:$0xff]
    %1431 = vmatprep.subr.mxu0 0.0
    %1432 = vmatpush1.msra.mxu0 %v1406
    %1433 = vmatprep.subr.mxu0 0.0
    %1434 = vmatpush1.msra.mxu0 %v1411
    %1435 = vmatprep.subr.mxu0 0.0
    %1436 = vmatpush1.msra.mxu0 0.0
    %1437 = vmatprep.subr.mxu0 0.0
    %1438 = vmatpush1.msra.mxu0 0.0
    %1439 = vmatprep.subr.mxu0 0.0
    %1440 = vmatpush1.msra.mxu0 0.0
    %1441 = vmatprep.subr.mxu0 0.0
    %1442 = vmatpush1.msra.mxu0 0.0
    %1443 = vmatprep.subr.mxu0 0.0
    %1444 = vmatpush1.msra.mxu0 0.0
    %1445 = vmatprep.subr.mxu0 0.0
    %1446 = vmatpush1.msra.mxu0 0.0
    %1447 = vmatprep.subr.mxu0 0.0
    %1448 = vmatpush1.msra.mxu0 0.0
    %1449 = vmatprep.subr.mxu0 0.0
    %1450 = vmatpush1.msra.mxu0 0.0
    %1451 = vmatprep.subr.mxu0 0.0
    %1452 = vmatpush1.msra.mxu0 0.0
    %1453 = vmatprep.subr.mxu0 0.0
    %1454 = vmatpush1.msra.mxu0 0.0
    %1455 = vmatprep.subr.mxu0 0.0
    %1456 = vmatpush1.msra.mxu0 0.0
    %1457 = vmatprep.subr.mxu0 0.0
    %1458 = vmatpush1.msra.mxu0 0.0
    %1459 = vmatprep.subr.mxu0 0.0
    %1460 = vmatpush1.msra.mxu0 0.0
    %1461 = vmatprep.subr.mxu0 0.0
    %1462 = vmatpush1.msra.mxu0 0.0
    %1463 = vmatprep.subr.mxu0 0.0
    %1464 = vmatpush1.msra.mxu0 0.0
    %1465 = vmatprep.subr.mxu0 0.0
    %1466 = vmatpush1.msra.mxu0 0.0
    %1467 = vmatprep.subr.mxu0 0.0
    %1468 = vmatpush1.msra.mxu0 0.0
    %1469 = vmatprep.subr.mxu0 0.0
    %1470 = vmatpush1.msra.mxu0 0.0
    %1471 = vmatprep.subr.mxu0 0.0
    %1472 = vmatpush1.msra.mxu0 0.0
    %1473 = vmatprep.subr.mxu0 0.0
    %1474 = vmatpush1.msra.mxu0 0.0
    %1475 = vmatprep.subr.mxu0 0.0
    %1476 = vmatpush1.msra.mxu0 0.0
    %1477 = vmatprep.subr.mxu0 0.0
    %1478 = vmatpush1.msra.mxu0 0.0
    %1479 = vmatprep.subr.mxu0 0.0
    %1480 = vmatpush1.msra.mxu0 0.0
    %1481 = vmatprep.subr.mxu0 0.0
    %1482 = vmatpush1.msra.mxu0 0.0
    %1483 = vmatprep.subr.mxu0 0.0
    %1484 = vmatpush1.msra.mxu0 0.0
    %1485 = vmatprep.subr.mxu0 0.0
    %1486 = vmatpush1.msra.mxu0 0.0
    %1487 = vmatprep.subr.mxu0 0.0
    %1488 = vmatpush1.msra.mxu0 0.0
    %1489 = vmatprep.subr.mxu0 0.0
    %1490 = vmatpush1.msra.mxu0 0.0
    %1491 = vmatprep.subr.mxu0 0.0
    %1492 = vmatpush1.msra.mxu0 0.0
    %1493 = vmatprep.subr.mxu0 0.0
    %1494 = vmatpush1.msra.mxu0 0.0
    %1495 = vmatprep.mubr.f32.mxu0 0.0
    %1496 = vmatmul.mubr.f32.gmra.mrb[0].mxu0 %v391
    %v1497 = vpop.f32.mrb[0].mxu0
    %v1498 = vadd.f32 0.0, %v1497
    %v1499 = vpop.f32.mrb[0].mxu0
    %1500 = vmatprep.mubr.f32.mxu0 0.0
    %1501 = vmatmul.mubr.f32.gmra.mrb[0].mxu0 %v394
    %v1502 = vpop.f32.mrb[0].mxu0
    %v1503 = vadd.f32 0.0, %v1502
    %v1504 = vpop.f32.mrb[0].mxu0
    %1505 = vdwg.mxu0
    %s1506 = scalar_lea.vmem [#allocation6], 768
    %v1507 = vld [vmem:[%s1506] sm:$0xff]
    %v1508 = vld [vmem:[%s1506 + $0x8] sm:$0xff]
    %v1509 = vld [vmem:[%s1506 + $0x10] sm:$0xff]
    %v1510 = vld [vmem:[%s1506 + $0x18] sm:$0xff]
    %v1511 = vld [vmem:[%s1506 + $0x20] sm:$0xff]
    %v1512 = vld [vmem:[%s1506 + $0x28] sm:$0xff]
    %v1513 = vld [vmem:[%s1506 + $0x30] sm:$0xff]
    %v1514 = vld [vmem:[%s1506 + $0x38] sm:$0xff]
    %v1515 = vld [vmem:[%s1506 + $0x40] sm:$0xff]
    %v1516 = vld [vmem:[%s1506 + $0x48] sm:$0xff]
    %v1517 = vld [vmem:[%s1506 + $0x50] sm:$0xff]
    %v1518 = vld [vmem:[%s1506 + $0x58] sm:$0xff]
    %v1519 = vld [vmem:[%s1506 + $0x60] sm:$0xff]
    %v1520 = vld [vmem:[%s1506 + $0x68] sm:$0xff]
    %v1521 = vld [vmem:[%s1506 + $0x70] sm:$0xff]
    %v1522 = vld [vmem:[%s1506 + $0x78] sm:$0xff]
    %1523 = vmatprep.subr.mxu0 0.0
    %1524 = vmatpush1.msra.mxu0 %v1507
    %1525 = vmatprep.subr.mxu0 0.0
    %1526 = vmatpush1.msra.mxu0 %v1508
    %1527 = vmatprep.subr.mxu0 0.0
    %1528 = vmatpush1.msra.mxu0 %v1509
    %1529 = vmatprep.subr.mxu0 0.0
    %1530 = vmatpush1.msra.mxu0 %v1510
    %1531 = vmatprep.subr.mxu0 0.0
    %1532 = vmatpush1.msra.mxu0 %v1511
    %1533 = vmatprep.subr.mxu0 0.0
    %1534 = vmatpush1.msra.mxu0 %v1512
    %1535 = vmatprep.subr.mxu0 0.0
    %1536 = vmatpush1.msra.mxu0 %v1513
    %1537 = vmatprep.subr.mxu0 0.0
    %1538 = vmatpush1.msra.mxu0 %v1514
    %1539 = vmatprep.subr.mxu0 0.0
    %1540 = vmatpush1.msra.mxu0 %v1515
    %1541 = vmatprep.subr.mxu0 0.0
    %1542 = vmatpush1.msra.mxu0 %v1516
    %1543 = vmatprep.subr.mxu0 0.0
    %1544 = vmatpush1.msra.mxu0 %v1517
    %1545 = vmatprep.subr.mxu0 0.0
    %1546 = vmatpush1.msra.mxu0 %v1518
    %1547 = vmatprep.subr.mxu0 0.0
    %1548 = vmatpush1.msra.mxu0 %v1519
    %1549 = vmatprep.subr.mxu0 0.0
    %1550 = vmatpush1.msra.mxu0 %v1520
    %1551 = vmatprep.subr.mxu0 0.0
    %1552 = vmatpush1.msra.mxu0 %v1521
    %1553 = vmatprep.subr.mxu0 0.0
    %1554 = vmatpush1.msra.mxu0 %v1522
    %1555 = vmatprep.subr.mxu0 0.0
    %1556 = vmatpush1.msra.mxu0 0.0
    %1557 = vmatprep.subr.mxu0 0.0
    %1558 = vmatpush1.msra.mxu0 0.0
    %1559 = vmatprep.subr.mxu0 0.0
    %1560 = vmatpush1.msra.mxu0 0.0
    %1561 = vmatprep.subr.mxu0 0.0
    %1562 = vmatpush1.msra.mxu0 0.0
    %1563 = vmatprep.subr.mxu0 0.0
    %1564 = vmatpush1.msra.mxu0 0.0
    %1565 = vmatprep.subr.mxu0 0.0
    %1566 = vmatpush1.msra.mxu0 0.0
    %1567 = vmatprep.subr.mxu0 0.0
    %1568 = vmatpush1.msra.mxu0 0.0
    %1569 = vmatprep.subr.mxu0 0.0
    %1570 = vmatpush1.msra.mxu0 0.0
    %1571 = vmatprep.subr.mxu0 0.0
    %1572 = vmatpush1.msra.mxu0 0.0
    %1573 = vmatprep.subr.mxu0 0.0
    %1574 = vmatpush1.msra.mxu0 0.0
    %1575 = vmatprep.subr.mxu0 0.0
    %1576 = vmatpush1.msra.mxu0 0.0
    %1577 = vmatprep.subr.mxu0 0.0
    %1578 = vmatpush1.msra.mxu0 0.0
    %1579 = vmatprep.subr.mxu0 0.0
    %1580 = vmatpush1.msra.mxu0 0.0
    %1581 = vmatprep.subr.mxu0 0.0
    %1582 = vmatpush1.msra.mxu0 0.0
    %1583 = vmatprep.subr.mxu0 0.0
    %1584 = vmatpush1.msra.mxu0 0.0
    %1585 = vmatprep.subr.mxu0 0.0
    %1586 = vmatpush1.msra.mxu0 0.0
    %1587 = vmatprep.mubr.f32.mxu0 0.0
    %1588 = vmatmul.mubr.f32.gmra.mrb[0].mxu0 %v1498
    %v1589 = vpop.f32.mrb[0].mxu0
    %v1590 = vadd.f32 0.0, %v1589
    %v1591 = vpop.f32.mrb[0].mxu0
    %1592 = vmatprep.mubr.f32.mxu0 0.0
    %1593 = vmatmul.mubr.f32.gmra.mrb[0].mxu0 %v1503
    %v1594 = vpop.f32.mrb[0].mxu0
    %v1595 = vadd.f32 0.0, %v1594
    %v1596 = vpop.f32.mrb[0].mxu0
    %1597 = vdwg.mxu0
    %1598 = vmatprep.subr.mxu0 0.0
    %1599 = vmatpush1.msra.mxu0 %v1415
    %1600 = vmatprep.subr.mxu0 0.0
    %1601 = vmatpush1.msra.mxu0 %v1416
    %1602 = vmatprep.subr.mxu0 0.0
    %1603 = vmatpush1.msra.mxu0 %v1417
    %1604 = vmatprep.subr.mxu0 0.0
    %1605 = vmatpush1.msra.mxu0 %v1418
    %1606 = vmatprep.subr.mxu0 0.0
    %1607 = vmatpush1.msra.mxu0 %v1419
    %1608 = vmatprep.subr.mxu0 0.0
    %1609 = vmatpush1.msra.mxu0 %v1420
    %1610 = vmatprep.subr.mxu0 0.0
    %1611 = vmatpush1.msra.mxu0 %v1421
    %1612 = vmatprep.subr.mxu0 0.0
    %1613 = vmatpush1.msra.mxu0 %v1422
    %1614 = vmatprep.subr.mxu0 0.0
    %1615 = vmatpush1.msra.mxu0 %v1423
    %1616 = vmatprep.subr.mxu0 0.0
    %1617 = vmatpush1.msra.mxu0 %v1424
    %1618 = vmatprep.subr.mxu0 0.0
    %1619 = vmatpush1.msra.mxu0 %v1425
    %1620 = vmatprep.subr.mxu0 0.0
    %1621 = vmatpush1.msra.mxu0 %v1426
    %1622 = vmatprep.subr.mxu0 0.0
    %1623 = vmatpush1.msra.mxu0 %v1427
    %1624 = vmatprep.subr.mxu0 0.0
    %1625 = vmatpush1.msra.mxu0 %v1428
    %1626 = vmatprep.subr.mxu0 0.0
    %1627 = vmatpush1.msra.mxu0 %v1429
    %1628 = vmatprep.subr.mxu0 0.0
    %1629 = vmatpush1.msra.mxu0 %v1430
    %1630 = vmatprep.subr.mxu0 0.0
    %1631 = vmatpush1.msra.mxu0 0.0
    %1632 = vmatprep.subr.mxu0 0.0
    %1633 = vmatpush1.msra.mxu0 0.0
    %1634 = vmatprep.subr.mxu0 0.0
    %1635 = vmatpush1.msra.mxu0 0.0
    %1636 = vmatprep.subr.mxu0 0.0
    %1637 = vmatpush1.msra.mxu0 0.0
    %1638 = vmatprep.subr.mxu0 0.0
    %1639 = vmatpush1.msra.mxu0 0.0
    %1640 = vmatprep.subr.mxu0 0.0
    %1641 = vmatpush1.msra.mxu0 0.0
    %1642 = vmatprep.subr.mxu0 0.0
    %1643 = vmatpush1.msra.mxu0 0.0
    %1644 = vmatprep.subr.mxu0 0.0
    %1645 = vmatpush1.msra.mxu0 0.0
    %1646 = vmatprep.subr.mxu0 0.0
    %1647 = vmatpush1.msra.mxu0 0.0
    %1648 = vmatprep.subr.mxu0 0.0
    %1649 = vmatpush1.msra.mxu0 0.0
    %1650 = vmatprep.subr.mxu0 0.0
    %1651 = vmatpush1.msra.mxu0 0.0
    %1652 = vmatprep.subr.mxu0 0.0
    %1653 = vmatpush1.msra.mxu0 0.0
    %1654 = vmatprep.subr.mxu0 0.0
    %1655 = vmatpush1.msra.mxu0 0.0
    %1656 = vmatprep.subr.mxu0 0.0
    %1657 = vmatpush1.msra.mxu0 0.0
    %1658 = vmatprep.subr.mxu0 0.0
    %1659 = vmatpush1.msra.mxu0 0.0
    %1660 = vmatprep.subr.mxu0 0.0
    %1661 = vmatpush1.msra.mxu0 0.0
    %1662 = vmatprep.mubr.f32.mxu0 0.0
    %1663 = vmatmul.mubr.f32.gmra.mrb[0].mxu0 %v1406
    %v1664 = vpop.f32.mrb[0].mxu0
    %v1665 = vadd.f32 %v1590, %v1664
    %v1666 = vpop.f32.mrb[0].mxu0
    %1667 = vmatprep.mubr.f32.mxu0 0.0
    %1668 = vmatmul.mubr.f32.gmra.mrb[0].mxu0 %v1411
    %v1669 = vpop.f32.mrb[0].mxu0
    %v1670 = vadd.f32 %v1595, %v1669
    %v1671 = vpop.f32.mrb[0].mxu0
    %1672 = vdwg.mxu0
    %1673 = vmatprep.subr.mxu0 0.0
    %1674 = vmatpush1.msra.mxu0 %v1172
    %1675 = vmatprep.subr.mxu0 0.0
    %1676 = vmatpush1.msra.mxu0 %v1173
    %1677 = vmatprep.subr.mxu0 0.0
    %1678 = vmatpush1.msra.mxu0 0.0
    %1679 = vmatprep.subr.mxu0 0.0
    %1680 = vmatpush1.msra.mxu0 0.0
    %1681 = vmatprep.subr.mxu0 0.0
    %1682 = vmatpush1.msra.mxu0 0.0
    %1683 = vmatprep.subr.mxu0 0.0
    %1684 = vmatpush1.msra.mxu0 0.0
    %1685 = vmatprep.subr.mxu0 0.0
    %1686 = vmatpush1.msra.mxu0 0.0
    %1687 = vmatprep.subr.mxu0 0.0
    %1688 = vmatpush1.msra.mxu0 0.0
    %1689 = vmatprep.subr.mxu0 0.0
    %1690 = vmatpush1.msra.mxu0 0.0
    %1691 = vmatprep.subr.mxu0 0.0
    %1692 = vmatpush1.msra.mxu0 0.0
    %1693 = vmatprep.subr.mxu0 0.0
    %1694 = vmatpush1.msra.mxu0 0.0
    %1695 = vmatprep.subr.mxu0 0.0
    %1696 = vmatpush1.msra.mxu0 0.0
    %1697 = vmatprep.subr.mxu0 0.0
    %1698 = vmatpush1.msra.mxu0 0.0
    %1699 = vmatprep.subr.mxu0 0.0
    %1700 = vmatpush1.msra.mxu0 0.0
    %1701 = vmatprep.subr.mxu0 0.0
    %1702 = vmatpush1.msra.mxu0 0.0
    %1703 = vmatprep.subr.mxu0 0.0
    %1704 = vmatpush1.msra.mxu0 0.0
    %1705 = vmatprep.subr.mxu0 0.0
    %1706 = vmatpush1.msra.mxu0 0.0
    %1707 = vmatprep.subr.mxu0 0.0
    %1708 = vmatpush1.msra.mxu0 0.0
    %1709 = vmatprep.subr.mxu0 0.0
    %1710 = vmatpush1.msra.mxu0 0.0
    %1711 = vmatprep.subr.mxu0 0.0
    %1712 = vmatpush1.msra.mxu0 0.0
    %1713 = vmatprep.subr.mxu0 0.0
    %1714 = vmatpush1.msra.mxu0 0.0
    %1715 = vmatprep.subr.mxu0 0.0
    %1716 = vmatpush1.msra.mxu0 0.0
    %1717 = vmatprep.subr.mxu0 0.0
    %1718 = vmatpush1.msra.mxu0 0.0
    %1719 = vmatprep.subr.mxu0 0.0
    %1720 = vmatpush1.msra.mxu0 0.0
    %1721 = vmatprep.subr.mxu0 0.0
    %1722 = vmatpush1.msra.mxu0 0.0
    %1723 = vmatprep.subr.mxu0 0.0
    %1724 = vmatpush1.msra.mxu0 0.0
    %1725 = vmatprep.subr.mxu0 0.0
    %1726 = vmatpush1.msra.mxu0 0.0
    %1727 = vmatprep.subr.mxu0 0.0
    %1728 = vmatpush1.msra.mxu0 0.0
    %1729 = vmatprep.subr.mxu0 0.0
    %1730 = vmatpush1.msra.mxu0 0.0
    %1731 = vmatprep.subr.mxu0 0.0
    %1732 = vmatpush1.msra.mxu0 0.0
    %1733 = vmatprep.subr.mxu0 0.0
    %1734 = vmatpush1.msra.mxu0 0.0
    %1735 = vmatprep.subr.mxu0 0.0
    %1736 = vmatpush1.msra.mxu0 0.0
    %1737 = vmatprep.mubr.f32.mxu0 0.0
    %1738 = vmatmul.mubr.f32.gmra.mrb[0].mxu0 %v730
    %v1739 = vpop.f32.mrb[0].mxu0
    %v1740 = vadd.f32 0.0, %v1739
    %v1741 = vpop.f32.mrb[0].mxu0
    %1742 = vdwg.mxu0
    %1744 = vset.pattern.permute.xlu0 0
    %1745 = vperm.xlu0 %1744, %v1336
    %v1746 = vpop.permute.xlu0 %1745
    %v1748 = vmul.f32 %v1746, %v1740
    %s1749 = scalar_lea.vmem [#allocation6], 896
    %v1750 = vld [vmem:[%s1749] sm:$0xff]
    %v1751 = vld [vmem:[%s1749 + $0x8] sm:$0xff]
    %v1752 = vld [vmem:[%s1749 + $0x10] sm:$0xff]
    %v1753 = vld [vmem:[%s1749 + $0x18] sm:$0xff]
    %v1754 = vld [vmem:[%s1749 + $0x20] sm:$0xff]
    %v1755 = vld [vmem:[%s1749 + $0x28] sm:$0xff]
    %v1756 = vld [vmem:[%s1749 + $0x30] sm:$0xff]
    %v1757 = vld [vmem:[%s1749 + $0x38] sm:$0xff]
    %v1758 = vld [vmem:[%s1749 + $0x40] sm:$0xff]
    %v1759 = vld [vmem:[%s1749 + $0x48] sm:$0xff]
    %v1760 = vld [vmem:[%s1749 + $0x50] sm:$0xff]
    %v1761 = vld [vmem:[%s1749 + $0x58] sm:$0xff]
    %v1762 = vld [vmem:[%s1749 + $0x60] sm:$0xff]
    %v1763 = vld [vmem:[%s1749 + $0x68] sm:$0xff]
    %v1764 = vld [vmem:[%s1749 + $0x70] sm:$0xff]
    %v1765 = vld [vmem:[%s1749 + $0x78] sm:$0xff]
    %1766 = vset.pattern.permute.xlu0 1
    %1767 = vperm.xlu0 %1766, %v1336
    %v1768 = vpop.permute.xlu0 %1767
    %v1770 = vmul.f32 %v1768, %v1740
    %s1771 = scalar_lea.vmem [#allocation6], 1024
    %v1772 = vld [vmem:[%s1771] sm:$0xff]
    %v1773 = vld [vmem:[%s1771 + $0x8] sm:$0xff]
    %v1774 = vld [vmem:[%s1771 + $0x10] sm:$0xff]
    %v1775 = vld [vmem:[%s1771 + $0x18] sm:$0xff]
    %v1776 = vld [vmem:[%s1771 + $0x20] sm:$0xff]
    %v1777 = vld [vmem:[%s1771 + $0x28] sm:$0xff]
    %v1778 = vld [vmem:[%s1771 + $0x30] sm:$0xff]
    %v1779 = vld [vmem:[%s1771 + $0x38] sm:$0xff]
    %v1780 = vld [vmem:[%s1771 + $0x40] sm:$0xff]
    %v1781 = vld [vmem:[%s1771 + $0x48] sm:$0xff]
    %v1782 = vld [vmem:[%s1771 + $0x50] sm:$0xff]
    %v1783 = vld [vmem:[%s1771 + $0x58] sm:$0xff]
    %v1784 = vld [vmem:[%s1771 + $0x60] sm:$0xff]
    %v1785 = vld [vmem:[%s1771 + $0x68] sm:$0xff]
    %v1786 = vld [vmem:[%s1771 + $0x70] sm:$0xff]
    %v1787 = vld [vmem:[%s1771 + $0x78] sm:$0xff]
    %1788 = vmatprep.subr.mxu0 0.0
    %1789 = vmatpush1.msra.mxu0 %v1772
    %1790 = vmatprep.subr.mxu0 0.0
    %1791 = vmatpush1.msra.mxu0 %v1773
    %1792 = vmatprep.subr.mxu0 0.0
    %1793 = vmatpush1.msra.mxu0 %v1774
    %1794 = vmatprep.subr.mxu0 0.0
    %1795 = vmatpush1.msra.mxu0 %v1775
    %1796 = vmatprep.subr.mxu0 0.0
    %1797 = vmatpush1.msra.mxu0 %v1776
    %1798 = vmatprep.subr.mxu0 0.0
    %1799 = vmatpush1.msra.mxu0 %v1777
    %1800 = vmatprep.subr.mxu0 0.0
    %1801 = vmatpush1.msra.mxu0 %v1778
    %1802 = vmatprep.subr.mxu0 0.0
    %1803 = vmatpush1.msra.mxu0 %v1779
    %1804 = vmatprep.subr.mxu0 0.0
    %1805 = vmatpush1.msra.mxu0 %v1780
    %1806 = vmatprep.subr.mxu0 0.0
    %1807 = vmatpush1.msra.mxu0 %v1781
    %1808 = vmatprep.subr.mxu0 0.0
    %1809 = vmatpush1.msra.mxu0 %v1782
    %1810 = vmatprep.subr.mxu0 0.0
    %1811 = vmatpush1.msra.mxu0 %v1783
    %1812 = vmatprep.subr.mxu0 0.0
    %1813 = vmatpush1.msra.mxu0 %v1784
    %1814 = vmatprep.subr.mxu0 0.0
    %1815 = vmatpush1.msra.mxu0 %v1785
    %1816 = vmatprep.subr.mxu0 0.0
    %1817 = vmatpush1.msra.mxu0 %v1786
    %1818 = vmatprep.subr.mxu0 0.0
    %1819 = vmatpush1.msra.mxu0 %v1787
    %1820 = vmatprep.subr.mxu0 0.0
    %1821 = vmatpush1.msra.mxu0 0.0
    %1822 = vmatprep.subr.mxu0 0.0
    %1823 = vmatpush1.msra.mxu0 0.0
    %1824 = vmatprep.subr.mxu0 0.0
    %1825 = vmatpush1.msra.mxu0 0.0
    %1826 = vmatprep.subr.mxu0 0.0
    %1827 = vmatpush1.msra.mxu0 0.0
    %1828 = vmatprep.subr.mxu0 0.0
    %1829 = vmatpush1.msra.mxu0 0.0
    %1830 = vmatprep.subr.mxu0 0.0
    %1831 = vmatpush1.msra.mxu0 0.0
    %1832 = vmatprep.subr.mxu0 0.0
    %1833 = vmatpush1.msra.mxu0 0.0
    %1834 = vmatprep.subr.mxu0 0.0
    %1835 = vmatpush1.msra.mxu0 0.0
    %1836 = vmatprep.subr.mxu0 0.0
    %1837 = vmatpush1.msra.mxu0 0.0
    %1838 = vmatprep.subr.mxu0 0.0
    %1839 = vmatpush1.msra.mxu0 0.0
    %1840 = vmatprep.subr.mxu0 0.0
    %1841 = vmatpush1.msra.mxu0 0.0
    %1842 = vmatprep.subr.mxu0 0.0
    %1843 = vmatpush1.msra.mxu0 0.0
    %1844 = vmatprep.subr.mxu0 0.0
    %1845 = vmatpush1.msra.mxu0 0.0
    %1846 = vmatprep.subr.mxu0 0.0
    %1847 = vmatpush1.msra.mxu0 0.0
    %1848 = vmatprep.subr.mxu0 0.0
    %1849 = vmatpush1.msra.mxu0 0.0
    %1850 = vmatprep.subr.mxu0 0.0
    %1851 = vmatpush1.msra.mxu0 0.0
    %1852 = vmatprep.mubr.f32.mxu0 0.0
    %1853 = vmatmul.mubr.f32.gmra.mrb[0].mxu0 %v1770
    %v1854 = vpop.f32.mrb[0].mxu0
    %v1855 = vadd.f32 0.0, %v1854
    %v1856 = vpop.f32.mrb[0].mxu0
    %1857 = vdwg.mxu0
    %1858 = vmatprep.subr.mxu0 0.0
    %1859 = vmatpush1.msra.mxu0 %v1750
    %1860 = vmatprep.subr.mxu0 0.0
    %1861 = vmatpush1.msra.mxu0 %v1751
    %1862 = vmatprep.subr.mxu0 0.0
    %1863 = vmatpush1.msra.mxu0 %v1752
    %1864 = vmatprep.subr.mxu0 0.0
    %1865 = vmatpush1.msra.mxu0 %v1753
    %1866 = vmatprep.subr.mxu0 0.0
    %1867 = vmatpush1.msra.mxu0 %v1754
    %1868 = vmatprep.subr.mxu0 0.0
    %1869 = vmatpush1.msra.mxu0 %v1755
    %1870 = vmatprep.subr.mxu0 0.0
    %1871 = vmatpush1.msra.mxu0 %v1756
    %1872 = vmatprep.subr.mxu0 0.0
    %1873 = vmatpush1.msra.mxu0 %v1757
    %1874 = vmatprep.subr.mxu0 0.0
    %1875 = vmatpush1.msra.mxu0 %v1758
    %1876 = vmatprep.subr.mxu0 0.0
    %1877 = vmatpush1.msra.mxu0 %v1759
    %1878 = vmatprep.subr.mxu0 0.0
    %1879 = vmatpush1.msra.mxu0 %v1760
    %1880 = vmatprep.subr.mxu0 0.0
    %1881 = vmatpush1.msra.mxu0 %v1761
    %1882 = vmatprep.subr.mxu0 0.0
    %1883 = vmatpush1.msra.mxu0 %v1762
    %1884 = vmatprep.subr.mxu0 0.0
    %1885 = vmatpush1.msra.mxu0 %v1763
    %1886 = vmatprep.subr.mxu0 0.0
    %1887 = vmatpush1.msra.mxu0 %v1764
    %1888 = vmatprep.subr.mxu0 0.0
    %1889 = vmatpush1.msra.mxu0 %v1765
    %1890 = vmatprep.subr.mxu0 0.0
    %1891 = vmatpush1.msra.mxu0 0.0
    %1892 = vmatprep.subr.mxu0 0.0
    %1893 = vmatpush1.msra.mxu0 0.0
    %1894 = vmatprep.subr.mxu0 0.0
    %1895 = vmatpush1.msra.mxu0 0.0
    %1896 = vmatprep.subr.mxu0 0.0
    %1897 = vmatpush1.msra.mxu0 0.0
    %1898 = vmatprep.subr.mxu0 0.0
    %1899 = vmatpush1.msra.mxu0 0.0
    %1900 = vmatprep.subr.mxu0 0.0
    %1901 = vmatpush1.msra.mxu0 0.0
    %1902 = vmatprep.subr.mxu0 0.0
    %1903 = vmatpush1.msra.mxu0 0.0
    %1904 = vmatprep.subr.mxu0 0.0
    %1905 = vmatpush1.msra.mxu0 0.0
    %1906 = vmatprep.subr.mxu0 0.0
    %1907 = vmatpush1.msra.mxu0 0.0
    %1908 = vmatprep.subr.mxu0 0.0
    %1909 = vmatpush1.msra.mxu0 0.0
    %1910 = vmatprep.subr.mxu0 0.0
    %1911 = vmatpush1.msra.mxu0 0.0
    %1912 = vmatprep.subr.mxu0 0.0
    %1913 = vmatpush1.msra.mxu0 0.0
    %1914 = vmatprep.subr.mxu0 0.0
    %1915 = vmatpush1.msra.mxu0 0.0
    %1916 = vmatprep.subr.mxu0 0.0
    %1917 = vmatpush1.msra.mxu0 0.0
    %1918 = vmatprep.subr.mxu0 0.0
    %1919 = vmatpush1.msra.mxu0 0.0
    %1920 = vmatprep.subr.mxu0 0.0
    %1921 = vmatpush1.msra.mxu0 0.0
    %1922 = vmatprep.mubr.f32.mxu0 0.0
    %1923 = vmatmul.mubr.f32.gmra.mrb[0].mxu0 %v1748
    %v1924 = vpop.f32.mrb[0].mxu0
    %v1925 = vadd.f32 %v1855, %v1924
    %v1926 = vpop.f32.mrb[0].mxu0
    %1927 = vdwg.mxu0
    %1928 = vset.pattern.permute.xlu0 2
    %1929 = vperm.xlu0 %1928, %v1336
    %v1930 = vpop.permute.xlu0 %1929
    %v1932 = vmul.f32 %v1930, %v1740
    %s1933 = scalar_lea.vmem [#allocation6], 1152
    %v1934 = vld [vmem:[%s1933] sm:$0xff]
    %v1935 = vld [vmem:[%s1933 + $0x8] sm:$0xff]
    %v1936 = vld [vmem:[%s1933 + $0x10] sm:$0xff]
    %v1937 = vld [vmem:[%s1933 + $0x18] sm:$0xff]
    %v1938 = vld [vmem:[%s1933 + $0x20] sm:$0xff]
    %v1939 = vld [vmem:[%s1933 + $0x28] sm:$0xff]
    %v1940 = vld [vmem:[%s1933 + $0x30] sm:$0xff]
    %v1941 = vld [vmem:[%s1933 + $0x38] sm:$0xff]
    %v1942 = vld [vmem:[%s1933 + $0x40] sm:$0xff]
    %v1943 = vld [vmem:[%s1933 + $0x48] sm:$0xff]
    %v1944 = vld [vmem:[%s1933 + $0x50] sm:$0xff]
    %v1945 = vld [vmem:[%s1933 + $0x58] sm:$0xff]
    %v1946 = vld [vmem:[%s1933 + $0x60] sm:$0xff]
    %v1947 = vld [vmem:[%s1933 + $0x68] sm:$0xff]
    %v1948 = vld [vmem:[%s1933 + $0x70] sm:$0xff]
    %v1949 = vld [vmem:[%s1933 + $0x78] sm:$0xff]
    %1950 = vmatprep.subr.mxu0 0.0
    %1951 = vmatpush1.msra.mxu0 %v1934
    %1952 = vmatprep.subr.mxu0 0.0
    %1953 = vmatpush1.msra.mxu0 %v1935
    %1954 = vmatprep.subr.mxu0 0.0
    %1955 = vmatpush1.msra.mxu0 %v1936
    %1956 = vmatprep.subr.mxu0 0.0
    %1957 = vmatpush1.msra.mxu0 %v1937
    %1958 = vmatprep.subr.mxu0 0.0
    %1959 = vmatpush1.msra.mxu0 %v1938
    %1960 = vmatprep.subr.mxu0 0.0
    %1961 = vmatpush1.msra.mxu0 %v1939
    %1962 = vmatprep.subr.mxu0 0.0
    %1963 = vmatpush1.msra.mxu0 %v1940
    %1964 = vmatprep.subr.mxu0 0.0
    %1965 = vmatpush1.msra.mxu0 %v1941
    %1966 = vmatprep.subr.mxu0 0.0
    %1967 = vmatpush1.msra.mxu0 %v1942
    %1968 = vmatprep.subr.mxu0 0.0
    %1969 = vmatpush1.msra.mxu0 %v1943
    %1970 = vmatprep.subr.mxu0 0.0
    %1971 = vmatpush1.msra.mxu0 %v1944
    %1972 = vmatprep.subr.mxu0 0.0
    %1973 = vmatpush1.msra.mxu0 %v1945
    %1974 = vmatprep.subr.mxu0 0.0
    %1975 = vmatpush1.msra.mxu0 %v1946
    %1976 = vmatprep.subr.mxu0 0.0
    %1977 = vmatpush1.msra.mxu0 %v1947
    %1978 = vmatprep.subr.mxu0 0.0
    %1979 = vmatpush1.msra.mxu0 %v1948
    %1980 = vmatprep.subr.mxu0 0.0
    %1981 = vmatpush1.msra.mxu0 %v1949
    %1982 = vmatprep.subr.mxu0 0.0
    %1983 = vmatpush1.msra.mxu0 0.0
    %1984 = vmatprep.subr.mxu0 0.0
    %1985 = vmatpush1.msra.mxu0 0.0
    %1986 = vmatprep.subr.mxu0 0.0
    %1987 = vmatpush1.msra.mxu0 0.0
    %1988 = vmatprep.subr.mxu0 0.0
    %1989 = vmatpush1.msra.mxu0 0.0
    %1990 = vmatprep.subr.mxu0 0.0
    %1991 = vmatpush1.msra.mxu0 0.0
    %1992 = vmatprep.subr.mxu0 0.0
    %1993 = vmatpush1.msra.mxu0 0.0
    %1994 = vmatprep.subr.mxu0 0.0
    %1995 = vmatpush1.msra.mxu0 0.0
    %1996 = vmatprep.subr.mxu0 0.0
    %1997 = vmatpush1.msra.mxu0 0.0
    %1998 = vmatprep.subr.mxu0 0.0
    %1999 = vmatpush1.msra.mxu0 0.0
    %2000 = vmatprep.subr.mxu0 0.0
    %2001 = vmatpush1.msra.mxu0 0.0
    %2002 = vmatprep.subr.mxu0 0.0
    %2003 = vmatpush1.msra.mxu0 0.0
    %2004 = vmatprep.subr.mxu0 0.0
    %2005 = vmatpush1.msra.mxu0 0.0
    %2006 = vmatprep.subr.mxu0 0.0
    %2007 = vmatpush1.msra.mxu0 0.0
    %2008 = vmatprep.subr.mxu0 0.0
    %2009 = vmatpush1.msra.mxu0 0.0
    %2010 = vmatprep.subr.mxu0 0.0
    %2011 = vmatpush1.msra.mxu0 0.0
    %2012 = vmatprep.subr.mxu0 0.0
    %2013 = vmatpush1.msra.mxu0 0.0
    %2014 = vmatprep.mubr.f32.mxu0 0.0
    %2015 = vmatmul.mubr.f32.gmra.mrb[0].mxu0 %v1932
    %v2016 = vpop.f32.mrb[0].mxu0
    %v2017 = vadd.f32 0.0, %v2016
    %v2018 = vpop.f32.mrb[0].mxu0
    %2019 = vdwg.mxu0
    %v2020 = vadd.f32 %v1925, %v2017
    %2021 = vmatprep.subr.mxu0 0.0
    %2022 = vmatpush1.msra.mxu0 %v2020
    %2023 = vmatprep.subr.mxu0 0.0
    %2024 = vmatpush1.msra.mxu0 0.0
    %2025 = vmatprep.subr.mxu0 0.0
    %2026 = vmatpush1.msra.mxu0 0.0
    %2027 = vmatprep.subr.mxu0 0.0
    %2028 = vmatpush1.msra.mxu0 0.0
    %2029 = vmatprep.subr.mxu0 0.0
    %2030 = vmatpush1.msra.mxu0 0.0
    %2031 = vmatprep.subr.mxu0 0.0
    %2032 = vmatpush1.msra.mxu0 0.0
    %2033 = vmatprep.subr.mxu0 0.0
    %2034 = vmatpush1.msra.mxu0 0.0
    %2035 = vmatprep.subr.mxu0 0.0
    %2036 = vmatpush1.msra.mxu0 0.0
    %2037 = vmatprep.subr.mxu0 0.0
    %2038 = vmatpush1.msra.mxu0 0.0
    %2039 = vmatprep.subr.mxu0 0.0
    %2040 = vmatpush1.msra.mxu0 0.0
    %2041 = vmatprep.subr.mxu0 0.0
    %2042 = vmatpush1.msra.mxu0 0.0
    %2043 = vmatprep.subr.mxu0 0.0
    %2044 = vmatpush1.msra.mxu0 0.0
    %2045 = vmatprep.subr.mxu0 0.0
    %2046 = vmatpush1.msra.mxu0 0.0
    %2047 = vmatprep.subr.mxu0 0.0
    %2048 = vmatpush1.msra.mxu0 0.0
    %2049 = vmatprep.subr.mxu0 0.0
    %2050 = vmatpush1.msra.mxu0 0.0
    %2051 = vmatprep.subr.mxu0 0.0
    %2052 = vmatpush1.msra.mxu0 0.0
    %2053 = vmatprep.subr.mxu0 0.0
    %2054 = vmatpush1.msra.mxu0 0.0
    %2055 = vmatprep.subr.mxu0 0.0
    %2056 = vmatpush1.msra.mxu0 0.0
    %2057 = vmatprep.subr.mxu0 0.0
    %2058 = vmatpush1.msra.mxu0 0.0
    %2059 = vmatprep.subr.mxu0 0.0
    %2060 = vmatpush1.msra.mxu0 0.0
    %2061 = vmatprep.subr.mxu0 0.0
    %2062 = vmatpush1.msra.mxu0 0.0
    %2063 = vmatprep.subr.mxu0 0.0
    %2064 = vmatpush1.msra.mxu0 0.0
    %2065 = vmatprep.subr.mxu0 0.0
    %2066 = vmatpush1.msra.mxu0 0.0
    %2067 = vmatprep.subr.mxu0 0.0
    %2068 = vmatpush1.msra.mxu0 0.0
    %2069 = vmatprep.subr.mxu0 0.0
    %2070 = vmatpush1.msra.mxu0 0.0
    %2071 = vmatprep.subr.mxu0 0.0
    %2072 = vmatpush1.msra.mxu0 0.0
    %2073 = vmatprep.subr.mxu0 0.0
    %2074 = vmatpush1.msra.mxu0 0.0
    %2075 = vmatprep.subr.mxu0 0.0
    %2076 = vmatpush1.msra.mxu0 0.0
    %2077 = vmatprep.subr.mxu0 0.0
    %2078 = vmatpush1.msra.mxu0 0.0
    %2079 = vmatprep.subr.mxu0 0.0
    %2080 = vmatpush1.msra.mxu0 0.0
    %2081 = vmatprep.subr.mxu0 0.0
    %2082 = vmatpush1.msra.mxu0 0.0
    %2083 = vmatprep.subr.mxu0 0.0
    %2084 = vmatpush1.msra.mxu0 0.0
    %2085 = vmatprep.mubr.f32.mxu0 0.0
    %2086 = vmatmul.mubr.f32.gmra.mrb[0].mxu0 %v1081
    %v2087 = vpop.f32.mrb[0].mxu0
    %v2088 = vadd.f32 0.0, %v2087
    %v2089 = vpop.f32.mrb[0].mxu0
    %2090 = vmatprep.mubr.f32.mxu0 0.0
    %2091 = vmatmul.mubr.f32.gmra.mrb[0].mxu0 %v1084
    %v2092 = vpop.f32.mrb[0].mxu0
    %v2093 = vadd.f32 0.0, %v2092
    %v2094 = vpop.f32.mrb[0].mxu0
    %2095 = vdwg.mxu0
    %v2096 = vadd.f32 %v1665, %v2088
    %v2097 = vadd.f32 %v1670, %v2093
    %s2098 = scalar_lea.vmem [#allocation7], 1
    %v2099 = vld [vmem:[%s2098] sm:$0x1]
    %v2101 = vlaneseq
    %v2102 = vshrl.u32 %v2101, 7
    %v2103 = vsub.s32 0, %v2102
    %v2104 = vrot.slane %v2099, %v2103
    %v2106 = vadd.f32 %v2096, %v2104
    %v2107 = vadd.f32 %v2097, %v2104
    %v2108 = vmax.f32 %v2106, 0.0
    %v2109 = vmax.f32 %v2107, 0.0
    %v2110 = vld [vmem:[#allocation9] sm:$0xff]
    %v2111 = vld [vmem:[#allocation9 + $0x8] sm:$0xff]
    %v2112 = vld [vmem:[#allocation9 + $0x10] sm:$0xff]
    %v2113 = vld [vmem:[#allocation9 + $0x18] sm:$0xff]
    %v2114 = vld [vmem:[#allocation9 + $0x20] sm:$0xff]
    %v2115 = vld [vmem:[#allocation9 + $0x28] sm:$0xff]
    %v2116 = vld [vmem:[#allocation9 + $0x30] sm:$0xff]
    %v2117 = vld [vmem:[#allocation9 + $0x38] sm:$0xff]
    %v2118 = vld [vmem:[#allocation9 + $0x40] sm:$0xff]
    %v2119 = vld [vmem:[#allocation9 + $0x48] sm:$0xff]
    %v2120 = vld [vmem:[#allocation9 + $0x50] sm:$0xff]
    %v2121 = vld [vmem:[#allocation9 + $0x58] sm:$0xff]
    %v2122 = vld [vmem:[#allocation9 + $0x60] sm:$0xff]
    %v2123 = vld [vmem:[#allocation9 + $0x68] sm:$0xff]
    %v2124 = vld [vmem:[#allocation9 + $0x70] sm:$0xff]
    %v2125 = vld [vmem:[#allocation9 + $0x78] sm:$0xff]
    %v2126 = vld [vmem:[#allocation10] sm:$0x1]
    %v2128 = vlaneseq
    %v2129 = vshrl.u32 %v2128, 7
    %v2130 = vsub.s32 0, %v2129
    %v2131 = vrot.slane %v2126, %v2130
    %2133 = vmatprep.subr.mxu0 0.0
    %2134 = vmatpush1.msra.mxu0 %v2110
    %2135 = vmatprep.subr.mxu0 0.0
    %2136 = vmatpush1.msra.mxu0 %v2111
    %2137 = vmatprep.subr.mxu0 0.0
    %2138 = vmatpush1.msra.mxu0 %v2112
    %2139 = vmatprep.subr.mxu0 0.0
    %2140 = vmatpush1.msra.mxu0 %v2113
    %2141 = vmatprep.subr.mxu0 0.0
    %2142 = vmatpush1.msra.mxu0 %v2114
    %2143 = vmatprep.subr.mxu0 0.0
    %2144 = vmatpush1.msra.mxu0 %v2115
    %2145 = vmatprep.subr.mxu0 0.0
    %2146 = vmatpush1.msra.mxu0 %v2116
    %2147 = vmatprep.subr.mxu0 0.0
    %2148 = vmatpush1.msra.mxu0 %v2117
    %2149 = vmatprep.subr.mxu0 0.0
    %2150 = vmatpush1.msra.mxu0 %v2118
    %2151 = vmatprep.subr.mxu0 0.0
    %2152 = vmatpush1.msra.mxu0 %v2119
    %2153 = vmatprep.subr.mxu0 0.0
    %2154 = vmatpush1.msra.mxu0 %v2120
    %2155 = vmatprep.subr.mxu0 0.0
    %2156 = vmatpush1.msra.mxu0 %v2121
    %2157 = vmatprep.subr.mxu0 0.0
    %2158 = vmatpush1.msra.mxu0 %v2122
    %2159 = vmatprep.subr.mxu0 0.0
    %2160 = vmatpush1.msra.mxu0 %v2123
    %2161 = vmatprep.subr.mxu0 0.0
    %2162 = vmatpush1.msra.mxu0 %v2124
    %2163 = vmatprep.subr.mxu0 0.0
    %2164 = vmatpush1.msra.mxu0 %v2125
    %2165 = vmatprep.subr.mxu0 0.0
    %2166 = vmatpush1.msra.mxu0 0.0
    %2167 = vmatprep.subr.mxu0 0.0
    %2168 = vmatpush1.msra.mxu0 0.0
    %2169 = vmatprep.subr.mxu0 0.0
    %2170 = vmatpush1.msra.mxu0 0.0
    %2171 = vmatprep.subr.mxu0 0.0
    %2172 = vmatpush1.msra.mxu0 0.0
    %2173 = vmatprep.subr.mxu0 0.0
    %2174 = vmatpush1.msra.mxu0 0.0
    %2175 = vmatprep.subr.mxu0 0.0
    %2176 = vmatpush1.msra.mxu0 0.0
    %2177 = vmatprep.subr.mxu0 0.0
    %2178 = vmatpush1.msra.mxu0 0.0
    %2179 = vmatprep.subr.mxu0 0.0
    %2180 = vmatpush1.msra.mxu0 0.0
    %2181 = vmatprep.subr.mxu0 0.0
    %2182 = vmatpush1.msra.mxu0 0.0
    %2183 = vmatprep.subr.mxu0 0.0
    %2184 = vmatpush1.msra.mxu0 0.0
    %2185 = vmatprep.subr.mxu0 0.0
    %2186 = vmatpush1.msra.mxu0 0.0
    %2187 = vmatprep.subr.mxu0 0.0
    %2188 = vmatpush1.msra.mxu0 0.0
    %2189 = vmatprep.subr.mxu0 0.0
    %2190 = vmatpush1.msra.mxu0 0.0
    %2191 = vmatprep.subr.mxu0 0.0
    %2192 = vmatpush1.msra.mxu0 0.0
    %2193 = vmatprep.subr.mxu0 0.0
    %2194 = vmatpush1.msra.mxu0 0.0
    %2195 = vmatprep.subr.mxu0 0.0
    %2196 = vmatpush1.msra.mxu0 0.0
    %2197 = vmatprep.mubr.f32.mxu0 0.0
    %2198 = vmatmul.mubr.f32.gmra.mrb[0].mxu0 %v2108
    %v2199 = vpop.f32.mrb[0].mxu0
    %v2200 = vadd.f32 %v2131, %v2199
    %v2201 = vpop.f32.mrb[0].mxu0
    %2202 = vmatprep.mubr.f32.mxu0 0.0
    %2203 = vmatmul.mubr.f32.gmra.mrb[0].mxu0 %v2109
    %v2204 = vpop.f32.mrb[0].mxu0
    %v2205 = vadd.f32 %v2131, %v2204
    %v2206 = vpop.f32.mrb[0].mxu0
    %2207 = vdwg.mxu0
    %2208 = vst [vmem:[%s15] sm:$0xff] %v2200
    %2209 = vst [vmem:[%s15 + $0x8] sm:$0xff] %v2205
    // Predicated region
    $region86: #{lanczosnet_forward.1} parent=1 // pred_check
      _
    $region87: #{lanczosnet_forward.1} parent=1 // pred_check_branch
      %2211 = sbr.rel (0) target = $region89
    $region88: #{lanczosnet_forward.1} parent=1 // pred_region
      _
    $region89: #{lanczosnet_forward.1} parent=1 // pred_fallthru
      _
    // Predicated region
    $region90: #{lanczosnet_forward.1} parent=1 // pred_check
      _
    $region91: #{lanczosnet_forward.1} parent=1 // pred_check_branch
      %2213 = sbr.rel (0) target = $region93
    $region92: #{lanczosnet_forward.1} parent=1 // pred_region
      _
    $region93: #{lanczosnet_forward.1} parent=1 // pred_fallthru
      _
    %2214 = vsyncpa [#allocation3], 1
    %2215 = vsyncpa [#allocation5], 1
    %2216 = vsyncpa [#allocation8], 1
    %2217 = vsyncpa [#allocation11], 1

</llo_original>
